<compile_context>
chip_gen: v6e
topology: v6e:2x2x1
jax: 0.10.0
libtpu: 0.0.40
codegen_flags: <defaults>
</compile_context>

<pallas_src>
import math

import jax
import jax.numpy as jnp
from jax import lax
from jax.experimental import pallas as pl
from jax.experimental.pallas import tpu as pltpu


def _mha_kernel(x_ref, wqkv_ref, wo_ref, bo_ref, o_ref,
                *, num_heads, head_dim, d_out):
    # x_ref block: (1, T, D_IN) -> take the single batch element
    x = x_ref[0]                                   # (T, d_in)
    T = x.shape[0]
    mxu_dtype = x_ref.dtype                        # keep MXU operands narrow (bf16 stays bf16)

    # Fused QKV projection: one wide MXU matmul, f32 accumulate.
    # (1/sqrt(head_dim) is already folded into the W_q columns by the wrapper.)
    qkv = jnp.dot(x, wqkv_ref[...], preferred_element_type=jnp.float32)   # (T, 3*d_out)

    def to_heads(a2d):
        # (T, d_out) -> (H, T, head_dim): head index becomes a batch dim so
        # both attention matmuls are batched, lane-dense einsums.
        return a2d.reshape(T, num_heads, head_dim).transpose(1, 0, 2)

    q = to_heads(qkv[:, :d_out]).astype(mxu_dtype)            # (H, T, hd)
    k = to_heads(qkv[:, d_out:2 * d_out]).astype(mxu_dtype)   # (H, T, hd)
    v = to_heads(qkv[:, 2 * d_out:]).astype(mxu_dtype)        # (H, T, hd)

    # Scores for all heads in one batched matmul (no materialized K transpose).
    scores = jnp.einsum('hqd,hkd->hqk', q, k,
                        preferred_element_type=jnp.float32)   # (H, T, T)

    # Causal mask, where-based, built from tile-local iotas.
    row = lax.broadcasted_iota(jnp.int32, (T, T), 0)
    col = lax.broadcasted_iota(jnp.int32, (T, T), 1)
    scores = jnp.where((row >= col)[None, :, :], scores, -1e30)

    # Numerically-stable softmax with deferred normalization.
    m = jnp.max(scores, axis=-1, keepdims=True)               # (H, T, 1)
    e = jnp.exp(scores - m)                                   # (H, T, T)
    denom = jnp.sum(e, axis=-1, keepdims=True)                # (H, T, 1)

    # Unnormalized context, then scale by 1/denom in f32 on the small tensor.
    ctx = jnp.einsum('hqk,hkd->hqd', e.astype(mxu_dtype), v,
                     preferred_element_type=jnp.float32)      # (H, T, hd)
    ctx = ctx * pl.reciprocal(denom, approx=True)             # EUP slot, O(H*T*hd)

    # Reassemble heads into a lane-dense (T, d_out) slab; output projection + bias.
    ctx_flat = ctx.transpose(1, 0, 2).reshape(T, d_out)       # (T, d_out)
    out = jnp.dot(ctx_flat.astype(mxu_dtype), wo_ref[...],
                  preferred_element_type=jnp.float32) + bo_ref[...]
    o_ref[0] = out.astype(o_ref.dtype)


def multi_head_attention(x, wq, wk, wv, wo, bo, *, num_heads):
    """x: (B, T, D_IN); wq/wk/wv: (D_IN, D_OUT); wo: (D_OUT, D_OUT); bo: (D_OUT,).

    Weights are stored pre-transposed so the kernel computes y = x @ W,
    matching nn.Linear's y = x @ W^T semantics.
    """
    B, T, d_in = x.shape
    d_out = wq.shape[1]
    assert d_out % num_heads == 0
    head_dim = d_out // num_heads
    scale = 1.0 / math.sqrt(head_dim)

    # Fuse the three projection weights outside the kernel (one input, one DMA)
    # and fold the softmax scale into W_q for free.
    w_qkv = jnp.concatenate([wq * scale, wk, wv], axis=1)      # (d_in, 3*d_out)
    bo2 = bo.reshape(1, d_out)

    # VMEM budget estimate (double-buffered blocks + in-kernel temporaries),
    # capped at 64 MiB so the limit is valid on v7x as well as v5e/v6e.
    itemsize = jnp.dtype(x.dtype).itemsize
    f32 = 4
    est = (
        2 * T * d_in * itemsize                       # x (double-buffered)
        + 2 * d_in * 3 * d_out * itemsize             # w_qkv
        + 2 * d_out * d_out * itemsize                # wo
        + 2 * d_out * f32                             # bo
        + 2 * T * d_out * itemsize                    # out
        + T * 3 * d_out * f32                         # qkv
        + 3 * num_heads * T * head_dim * itemsize     # q, k, v
        + 3 * num_heads * T * T * f32                 # scores / e temporaries
        + 2 * num_heads * T * head_dim * f32          # ctx (+ relayout copy)
        + T * d_out * f32                             # projected output
    )
    vmem_limit = int(min(max(2 * est, 32 * 1024 * 1024), 64 * 1024 * 1024))

    kernel = lambda *refs: _mha_kernel(*refs, num_heads=num_heads,
                                       head_dim=head_dim, d_out=d_out)

    return pl.pallas_call(
        kernel,
        out_shape=jax.ShapeDtypeStruct((B, T, d_out), x.dtype),
        grid_spec=pltpu.PrefetchScalarGridSpec(
            num_scalar_prefetch=0,
            grid=(B,),
            in_specs=[
                pl.BlockSpec((1, T, d_in), lambda b: (b, 0, 0)),
                pl.BlockSpec((d_in, 3 * d_out), lambda b: (0, 0)),
                pl.BlockSpec((d_out, d_out), lambda b: (0, 0)),
                pl.BlockSpec((1, d_out), lambda b: (0, 0)),
            ],
            out_specs=pl.BlockSpec((1, T, d_out), lambda b: (b, 0, 0)),
        ),
        compiler_params=pltpu.CompilerParams(
            dimension_semantics=("parallel",),
            vmem_limit_bytes=vmem_limit),
    )(x, w_qkv, wo, bo2)


def _reference(x, wq, wk, wv, wo, bo, *, num_heads):
    # pure-JAX reference mirroring the PyTorch forward (eval mode)
    B, T, d_in = x.shape
    d_out = wq.shape[1]
    hd = d_out // num_heads
    q = (x @ wq).reshape(B, T, num_heads, hd).transpose(0, 2, 1, 3)
    k = (x @ wk).reshape(B, T, num_heads, hd).transpose(0, 2, 1, 3)
    v = (x @ wv).reshape(B, T, num_heads, hd).transpose(0, 2, 1, 3)
    scores = jnp.einsum("bhqd,bhkd->bhqk", q, k)
    mask = jnp.triu(jnp.ones((T, T), bool), k=1)
    scores = jnp.where(mask[None, None], -jnp.inf, scores)
    w = jax.nn.softmax(scores / math.sqrt(hd), axis=-1)
    ctx = jnp.einsum("bhqk,bhkd->bhqd", w, v).transpose(0, 2, 1, 3).reshape(B, T, d_out)
    return ctx @ wo + bo


if __name__ == "__main__":
    # small shapes consistent with the module
    B, T, D_IN, D_OUT, NUM_HEADS = 2, 8, 32, 32, 4

    key = jax.random.PRNGKey(0)
    kx, k1, k2, k3, k4, k5 = jax.random.split(key, 6)

    x = jax.random.normal(kx, (B, T, D_IN), dtype=jnp.float32)
    # deterministic parameter init (synthetic weights, ~nn.Linear scale)
    s_in = 1.0 / math.sqrt(D_IN)
    s_out = 1.0 / math.sqrt(D_OUT)
    wq = jax.random.uniform(k1, (D_IN, D_OUT), jnp.float32, -s_in, s_in)
    wk = jax.random.uniform(k2, (D_IN, D_OUT), jnp.float32, -s_in, s_in)
    wv = jax.random.uniform(k3, (D_IN, D_OUT), jnp.float32, -s_in, s_in)
    wo = jax.random.uniform(k4, (D_OUT, D_OUT), jnp.float32, -s_out, s_out)
    bo = jax.random.uniform(k5, (D_OUT,), jnp.float32, -s_out, s_out)

    out = multi_head_attention(x, wq, wk, wv, wo, bo, num_heads=NUM_HEADS)
    out = jax.block_until_ready(out)

    ref = _reference(x, wq, wk, wv, wo, bo, num_heads=NUM_HEADS)
    assert out.shape == (B, T, D_OUT)
    # tolerance relaxed slightly for the approx (EUP) reciprocal in softmax
    assert jnp.allclose(out, ref, atol=5e-3, rtol=5e-3), float(
        jnp.max(jnp.abs(out - ref)))

    print("KERNEL_OK")
</pallas_src>

<mosaic_0001>
module attributes {stable_mosaic.version = 11 : i64} {
  func.func @_lambda_(%arg0: i32, %arg1: memref<1x8x32xf32, #tpu.memory_space<vmem>>, %arg2: memref<32x96xf32, #tpu.memory_space<vmem>>, %arg3: memref<32x32xf32, #tpu.memory_space<vmem>>, %arg4: memref<1x32xf32, #tpu.memory_space<vmem>>, %arg5: memref<1x8x32xf32, #tpu.memory_space<vmem>>) attributes {dimension_semantics = [#tpu.dimension_semantics<parallel>], iteration_bounds = array<i64: 2>, scalar_prefetch = 0 : i64, scratch_operands = 0 : i64, tpu.core_type = #tpu.core_type<tc>, window_params = [{transform_indices = @transform_0, window_bounds = array<i64: 1, 8, 32>}, {pipeline_mode = #tpu.pipeline_mode<synchronous>, transform_indices = @transform_1, window_bounds = array<i64: 32, 96>}, {pipeline_mode = #tpu.pipeline_mode<synchronous>, transform_indices = @transform_2, window_bounds = array<i64: 32, 32>}, {pipeline_mode = #tpu.pipeline_mode<synchronous>, transform_indices = @transform_3, window_bounds = array<i64: 1, 32>}, {transform_indices = @transform_4, window_bounds = array<i64: 1, 8, 32>}]} {
    %c0 = arith.constant 0 : index
    %c0_0 = arith.constant 0 : index
    %c0_1 = arith.constant 0 : index
    %0 = vector.load %arg1[%c0, %c0_0, %c0_1] : memref<1x8x32xf32, #tpu.memory_space<vmem>>, vector<1x8x32xf32>
    %1 = vector.shape_cast %0 : vector<1x8x32xf32> to vector<8x32xf32>
    %c0_2 = arith.constant 0 : index
    %c0_3 = arith.constant 0 : index
    %2 = vector.load %arg2[%c0_2, %c0_3] : memref<32x96xf32, #tpu.memory_space<vmem>>, vector<32x96xf32>
    %cst = arith.constant dense<0.000000e+00> : vector<8x96xf32>
    %3 = tpu.matmul %1, %2, %cst {dimension_numbers = #tpu.dot_dimension_numbers<[1], [0], [0], [1], [0, 0, 1, 1], [], []>} : vector<8x32xf32>, vector<32x96xf32>, vector<8x96xf32> -> vector<8x96xf32>
    %4 = vector.extract_strided_slice %3 {offsets = [0, 0], sizes = [8, 32], strides = [1, 1]} : vector<8x96xf32> to vector<8x32xf32>
    %5 = vector.shape_cast %4 : vector<8x32xf32> to vector<8x4x8xf32>
    %6 = tpu.transpose %5, [1, 0, 2] : vector<8x4x8xf32> -> vector<4x8x8xf32>
    %7 = vector.extract_strided_slice %3 {offsets = [0, 32], sizes = [8, 32], strides = [1, 1]} : vector<8x96xf32> to vector<8x32xf32>
    %8 = vector.shape_cast %7 : vector<8x32xf32> to vector<8x4x8xf32>
    %9 = tpu.transpose %8, [1, 0, 2] : vector<8x4x8xf32> -> vector<4x8x8xf32>
    %10 = vector.extract_strided_slice %3 {offsets = [0, 64], sizes = [8, 32], strides = [1, 1]} : vector<8x96xf32> to vector<8x32xf32>
    %11 = vector.shape_cast %10 : vector<8x32xf32> to vector<8x4x8xf32>
    %12 = tpu.transpose %11, [1, 0, 2] : vector<8x4x8xf32> -> vector<4x8x8xf32>
    "tpu.trace_start"() <{level = 10 : i32, message = "hqd,hkd->hqk"}> : () -> ()
    %cst_4 = arith.constant dense<0.000000e+00> : vector<4x8x8xf32>
    %13 = tpu.matmul %6, %9, %cst_4 {dimension_numbers = #tpu.dot_dimension_numbers<[2], [2], [1], [1], [0, 0, 0, 1, 1, 1], [0], [0]>} : vector<4x8x8xf32>, vector<4x8x8xf32>, vector<4x8x8xf32> -> vector<4x8x8xf32>
    "tpu.trace_stop"() : () -> ()
    %14 = tpu.iota {dimensions = array<i32: 0>} : vector<8x8xi32>
    %15 = tpu.iota {dimensions = array<i32: 1>} : vector<8x8xi32>
    %16 = arith.cmpi sge, %14, %15 : vector<8x8xi32>
    %17 = vector.shape_cast %16 : vector<8x8xi1> to vector<1x8x8xi1>
    %cst_5 = arith.constant -1.000000e+30 : f32
    %18 = vector.shape_cast %17 : vector<1x8x8xi1> to vector<1x8x8xi1>
    %19 = vector.broadcast %18 : vector<1x8x8xi1> to vector<4x8x8xi1>
    %20 = vector.broadcast %cst_5 : f32 to vector<4x8x8xf32>
    %21 = arith.select %19, %13, %20 : vector<4x8x8xi1>, vector<4x8x8xf32>
    %cst_6 = arith.constant dense<0xFF800000> : vector<4x8xf32>
    %22 = vector.multi_reduction <maximumf>, %21, %cst_6 [2] : vector<4x8x8xf32> to vector<4x8xf32>
    %23 = vector.shape_cast %22 : vector<4x8xf32> to vector<4x8x1xf32>
    %24 = vector.broadcast %23 : vector<4x8x1xf32> to vector<4x8x8xf32>
    %25 = arith.subf %21, %24 : vector<4x8x8xf32>
    %26 = math.exp %25 : vector<4x8x8xf32>
    %cst_7 = arith.constant dense<0.000000e+00> : vector<4x8xf32>
    %27 = vector.multi_reduction <add>, %26, %cst_7 [2] : vector<4x8x8xf32> to vector<4x8xf32>
    %28 = vector.shape_cast %27 : vector<4x8xf32> to vector<4x8x1xf32>
    "tpu.trace_start"() <{level = 10 : i32, message = "hqk,hkd->hqd"}> : () -> ()
    %cst_8 = arith.constant dense<0.000000e+00> : vector<4x8x8xf32>
    %29 = tpu.matmul %26, %12, %cst_8 {dimension_numbers = #tpu.dot_dimension_numbers<[2], [1], [1], [2], [0, 0, 0, 1, 1, 2], [0], [0]>} : vector<4x8x8xf32>, vector<4x8x8xf32>, vector<4x8x8xf32> -> vector<4x8x8xf32>
    "tpu.trace_stop"() : () -> ()
    %30 = tpu.reciprocal %28 {approx = true} : vector<4x8x1xf32> -> vector<4x8x1xf32>
    %31 = vector.broadcast %30 : vector<4x8x1xf32> to vector<4x8x8xf32>
    %32 = arith.mulf %29, %31 : vector<4x8x8xf32>
    %33 = tpu.transpose %32, [1, 0, 2] : vector<4x8x8xf32> -> vector<8x4x8xf32>
    %34 = vector.shape_cast %33 : vector<8x4x8xf32> to vector<8x32xf32>
    %c0_9 = arith.constant 0 : index
    %c0_10 = arith.constant 0 : index
    %35 = vector.load %arg3[%c0_9, %c0_10] : memref<32x32xf32, #tpu.memory_space<vmem>>, vector<32x32xf32>
    %cst_11 = arith.constant dense<0.000000e+00> : vector<8x32xf32>
    %36 = tpu.matmul %34, %35, %cst_11 {dimension_numbers = #tpu.dot_dimension_numbers<[1], [0], [0], [1], [0, 0, 1, 1], [], []>} : vector<8x32xf32>, vector<32x32xf32>, vector<8x32xf32> -> vector<8x32xf32>
    %c0_12 = arith.constant 0 : index
    %c0_13 = arith.constant 0 : index
    %37 = vector.load %arg4[%c0_12, %c0_13] : memref<1x32xf32, #tpu.memory_space<vmem>>, vector<1x32xf32>
    %38 = vector.broadcast %37 : vector<1x32xf32> to vector<8x32xf32>
    %39 = arith.addf %36, %38 : vector<8x32xf32>
    %c0_14 = arith.constant 0 : index
    %c0_15 = arith.constant 0 : index
    %c0_16 = arith.constant 0 : index
    %40 = vector.load %arg5[%c0_14, %c0_15, %c0_16] : memref<1x8x32xf32, #tpu.memory_space<vmem>>, vector<1x8x32xf32>
    %41 = vector.shape_cast %40 : vector<1x8x32xf32> to vector<8x32xf32>
    %42 = vector.shape_cast %39 : vector<8x32xf32> to vector<1x8x32xf32>
    tpu.vector_store %arg5[%c0_14, %c0_15, %c0_16], %42 {strides = array<i32>} : memref<1x8x32xf32, #tpu.memory_space<vmem>>, vector<1x8x32xf32>,
    return
  }
  func.func @transform_0(%arg0: i32) -> (i32, i32, i32) {
    %c0_i32 = arith.constant 0 : i32
    %c0_i32_0 = arith.constant 0 : i32
    %c0_i32_1 = arith.constant 0 : i32
    return %arg0, %c0_i32, %c0_i32_0 : i32, i32, i32
  }
  func.func @transform_1(%arg0: i32) -> (i32, i32) {
    %c0_i32 = arith.constant 0 : i32
    %c0_i32_0 = arith.constant 0 : i32
    %c0_i32_1 = arith.constant 0 : i32
    return %c0_i32, %c0_i32_0 : i32, i32
  }
  func.func @transform_2(%arg0: i32) -> (i32, i32) {
    %c0_i32 = arith.constant 0 : i32
    %c0_i32_0 = arith.constant 0 : i32
    %c0_i32_1 = arith.constant 0 : i32
    return %c0_i32, %c0_i32_0 : i32, i32
  }
  func.func @transform_3(%arg0: i32) -> (i32, i32) {
    %c0_i32 = arith.constant 0 : i32
    %c0_i32_0 = arith.constant 0 : i32
    %c0_i32_1 = arith.constant 0 : i32
    return %c0_i32, %c0_i32_0 : i32, i32
  }
  func.func @transform_4(%arg0: i32) -> (i32, i32, i32) {
    %c0_i32 = arith.constant 0 : i32
    %c0_i32_0 = arith.constant 0 : i32
    %c0_i32_1 = arith.constant 0 : i32
    return %arg0, %c0_i32, %c0_i32_0 : i32, i32, i32
  }
}

</mosaic_0001>

<llo_original>
// kernel: tpu_custom_call.1
$region0: #{tpu_custom_call.1}
  #allocation0 [shape = 'u32[]', space=smem, size = 0x4, offset = 0x4, fixed_abs, tag = 'smem constant byte address 0x4 - core index']
  #allocation1 [shape = 'u32[144,128]{1,0:T(1,128)}', space=vmem, size = 0x12000, scoped, tag = 'internal scratch']
  %s0 = inlined_call_operand.hbm [shape: f32[2,8,32], index: 0, kind: input, shape index: {}]
  %s1 = inlined_call_operand.hbm [shape: f32[32,96], index: 1, kind: input, shape index: {}]
  %s2 = inlined_call_operand.hbm [shape: f32[32,32], index: 2, kind: input, shape index: {}]
  %s3 = inlined_call_operand.vmem [shape: f32[1,32], index: 3, kind: input, shape index: {}]
  %s4 = inlined_call_operand.hbm [shape: f32[2,8,32], index: 4, kind: output, shape index: {}]
  %s5 = sld [smem:[#allocation0]]
  $region61: #{tpu_custom_call.1} parent=0
    _
  %s7 = ssub.s32 1, %s5
  %s8 = scalar_select 0, %s7, %s5
  $region1: #{tpu_custom_call.1} parent=0
    #allocation2 [shape = 'u8[8192]{0}', space=vmem, size = 0x2000, scoped, tag = 'input window, operand 0']
    #allocation3 [shape = 's32[2]{0}', space=sflag, size = 0x8, scoped, tag = 'scoped memory for tpu_custom_call.1']
    #allocation4 [shape = 's32[2]{0}', space=sflag, size = 0x8, scoped, tag = 'scoped memory for tpu_custom_call.1']
    #allocation5 [shape = 'u8[16384]{0}', space=vmem, size = 0x4000, scoped, tag = 'input window, operand 1, single buffered']
    #allocation6 [shape = 's32[1]{0}', space=sflag, size = 0x4, scoped, tag = 'scoped memory for tpu_custom_call.1']
    #allocation7 [shape = 'u8[16384]{0}', space=vmem, size = 0x4000, scoped, tag = 'input window, operand 2, single buffered']
    #allocation8 [shape = 'u8[8192]{0}', space=vmem, size = 0x2000, scoped, tag = 'output window, operand 0']
    %9 = vsyncpa [#allocation3], 0
    %s10 = scalar_lea.sflag [#allocation3], 1
    %11 = vsyncpa %s10, 0
    %12 = vsyncpa [#allocation6], 0
    %13 = vsyncpa [#allocation4], 0
    %s14 = scalar_lea.sflag [#allocation4], 1
    %15 = vsyncpa %s14, 0
    loop: start=0, step=1, limit=4
    $region2: #{tpu_custom_call.1} parent=1 // loop_pre_header
      _
    $region3: #{tpu_custom_call.1} parent=1 // loop_header
      %s17 = sphi 0, %s21
      %p18 = scmp.ge.s32.totalorder %s17, 4
      %s27 = sphi 0, %s29
      %s30 = sphi 0, %s27
      %s31 = sphi 0, %s30
      %s47 = sphi 0, %s31
      %s51 = sphi 0, %s51
      %s53 = sphi 0, %s51
      %s54 = sphi 0, %s53
      %s68 = sphi 0, %s54
      %s72 = sphi 0, %s72
      %s74 = sphi 0, %s72
      %s75 = sphi 0, %s74
      %s89 = sphi 0, %s75
      %s93 = sphi 0, %s93
      %s95 = sphi 0, %s93
      %s96 = sphi 0, %s95
      %s110 = sphi 0, %s96
      %s116 = sphi 0, %s118
      %s119 = sphi 0, %s116
      %s120 = sphi 0, %s119
      %s136 = sphi 0, %s120
    $region4: #{tpu_custom_call.1} parent=1 // loop_header_branch
      %20 = sbr.rel (%p18) target = $region8
    $region5: #{tpu_custom_call.1} parent=1 // loop_body
      %s22 = ssub.s32 %s17, 1
      %s23 = ssub.s32 %s17, 2
      %s24 = sadd.s32 %s17, 1
      %s25 = ssub.s32 %s17, %s24
      %p26 = scmp.eq.s32.totalorder %s25, 0
      %s28 = sadd.s32 %s27, 1
      %s29 = scalar_select %p26, %s27, %s28
      %p32 = pneg %p26
      %p33 = scmp.eq.s32.totalorder %s17, 1
      %p34 = por %p32, %p33
      %p35 = scmp.ne.s32.totalorder %s27, %s30
      %p36 = scmp.eq.s32.totalorder %s17, 0
      %p37 = por %p35, %p36
      %p38 = scmp.ne.s32.totalorder %s27, %s30
      %p39 = scmp.eq.s32.totalorder %s22, 1
      %p40 = por %p38, %p39
      %p41 = scmp.ne.s32.totalorder %s30, %s31
      %p42 = scmp.eq.s32.totalorder %s22, 0
      %p43 = por %p41, %p42
      %p44 = scmp.ne.s32.totalorder %s30, %s31
      %p45 = scmp.eq.s32.totalorder %s23, 1
      %p46 = por %p44, %p45
      %p48 = scmp.ne.s32.totalorder %s31, %s47
      %p49 = scmp.eq.s32.totalorder %s23, 0
      %p50 = por %p48, %p49
      %s52 = sadd.s32 %s51, 1
      %p55 = scmp.eq.s32.totalorder %s17, 1
      %p56 = scmp.ne.s32.totalorder %s51, %s53
      %p57 = scmp.eq.s32.totalorder %s17, 0
      %p58 = por %p56, %p57
      %p59 = scmp.ne.s32.totalorder %s51, %s53
      %p60 = scmp.eq.s32.totalorder %s22, 1
      %p61 = por %p59, %p60
      %p62 = scmp.ne.s32.totalorder %s53, %s54
      %p63 = scmp.eq.s32.totalorder %s22, 0
      %p64 = por %p62, %p63
      %p65 = scmp.ne.s32.totalorder %s53, %s54
      %p66 = scmp.eq.s32.totalorder %s23, 1
      %p67 = por %p65, %p66
      %p69 = scmp.ne.s32.totalorder %s54, %s68
      %p70 = scmp.eq.s32.totalorder %s23, 0
      %p71 = por %p69, %p70
      %s73 = sadd.s32 %s72, 1
      %p76 = scmp.eq.s32.totalorder %s17, 1
      %p77 = scmp.ne.s32.totalorder %s72, %s74
      %p78 = scmp.eq.s32.totalorder %s17, 0
      %p79 = por %p77, %p78
      %p80 = scmp.ne.s32.totalorder %s72, %s74
      %p81 = scmp.eq.s32.totalorder %s22, 1
      %p82 = por %p80, %p81
      %p83 = scmp.ne.s32.totalorder %s74, %s75
      %p84 = scmp.eq.s32.totalorder %s22, 0
      %p85 = por %p83, %p84
      %p86 = scmp.ne.s32.totalorder %s74, %s75
      %p87 = scmp.eq.s32.totalorder %s23, 1
      %p88 = por %p86, %p87
      %p90 = scmp.ne.s32.totalorder %s75, %s89
      %p91 = scmp.eq.s32.totalorder %s23, 0
      %p92 = por %p90, %p91
      %s94 = sadd.s32 %s93, 1
      %p97 = scmp.eq.s32.totalorder %s17, 1
      %p98 = scmp.ne.s32.totalorder %s93, %s95
      %p99 = scmp.eq.s32.totalorder %s17, 0
      %p100 = por %p98, %p99
      %p101 = scmp.ne.s32.totalorder %s93, %s95
      %p102 = scmp.eq.s32.totalorder %s22, 1
      %p103 = por %p101, %p102
      %p104 = scmp.ne.s32.totalorder %s95, %s96
      %p105 = scmp.eq.s32.totalorder %s22, 0
      %p106 = por %p104, %p105
      %p107 = scmp.ne.s32.totalorder %s95, %s96
      %p108 = scmp.eq.s32.totalorder %s23, 1
      %p109 = por %p107, %p108
      %p111 = scmp.ne.s32.totalorder %s96, %s110
      %p112 = scmp.eq.s32.totalorder %s23, 0
      %p113 = por %p111, %p112
      %s114 = ssub.s32 %s17, %s24
      %p115 = scmp.eq.s32.totalorder %s114, 0
      %s117 = sadd.s32 %s116, 1
      %s118 = scalar_select %p115, %s116, %s117
      %p121 = pneg %p115
      %p122 = scmp.eq.s32.totalorder %s17, 1
      %p123 = por %p121, %p122
      %p124 = scmp.ne.s32.totalorder %s116, %s119
      %p125 = scmp.eq.s32.totalorder %s17, 0
      %p126 = por %p124, %p125
      %p127 = scmp.ne.s32.totalorder %s116, %s119
      %p128 = scmp.eq.s32.totalorder %s22, 1
      %p129 = por %p127, %p128
      %p130 = scmp.ne.s32.totalorder %s119, %s120
      %p131 = scmp.eq.s32.totalorder %s22, 0
      %p132 = por %p130, %p131
      %p133 = scmp.ne.s32.totalorder %s119, %s120
      %p134 = scmp.eq.s32.totalorder %s23, 1
      %p135 = por %p133, %p134
      %p137 = scmp.ne.s32.totalorder %s120, %s136
      %p138 = scmp.eq.s32.totalorder %s23, 0
      %p139 = por %p137, %p138
      %p140 = scmp.le.s32.totalorder 1, %s17
      %p141 = scmp.lt.s32.totalorder %s17, 3
      %p142 = pnand %p140, %p141
      %p143 = pneg %p142
      // Predicated region
      $region9: #{tpu_custom_call.1} parent=5 // pred_check
        _
      $region10: #{tpu_custom_call.1} parent=5 // pred_check_branch
        %145 = sbr.rel (%p142) target = $region12
      $region11: #{tpu_custom_call.1} parent=5 // pred_region
        %s146 = ssub.s32 %s17, 1
        // Predicated region
        $region13: #{tpu_custom_call.1} parent=11 // pred_check
          %p147 = pneg %p64
        $region14: #{tpu_custom_call.1} parent=11 // pred_check_branch
          %149 = sbr.rel (%p147) target = $region16
        $region15: #{tpu_custom_call.1} parent=11 // pred_region
          %s151 = ssub.s32 512, 512
          %152 = vsyncadd [#allocation6], %s151
          %s153 = sshll.u32 [#allocation5], 4
          %s154 = int_to_ptr.vmem [resolvable:$true] %s153
          %159 = dma.hbm_to_vmem [thread:$0]  %s1, 512, %s154, [#allocation6], 128, 128, 8
        $region16: #{tpu_custom_call.1} parent=11 // pred_fallthru
          _
        // Predicated region
        $region17: #{tpu_custom_call.1} parent=11 // pred_check
          %p160 = pneg %p85
        $region18: #{tpu_custom_call.1} parent=11 // pred_check_branch
          %162 = sbr.rel (%p160) target = $region20
        $region19: #{tpu_custom_call.1} parent=11 // pred_region
          %s164 = ssub.s32 512, 512
          %165 = vsyncadd [#allocation6], %s164
          %s166 = sshll.u32 [#allocation7], 4
          %s167 = int_to_ptr.vmem [resolvable:$true] %s166
          %172 = dma.hbm_to_vmem [thread:$0]  %s2, 512, %s167, [#allocation6], 128, 128, 8
        $region20: #{tpu_custom_call.1} parent=11 // pred_fallthru
          _
        // Predicated region
        $region21: #{tpu_custom_call.1} parent=11 // pred_check
          %p173 = pneg %p106
        $region22: #{tpu_custom_call.1} parent=11 // pred_check_branch
          %175 = sbr.rel (%p173) target = $region24
        $region23: #{tpu_custom_call.1} parent=11 // pred_region
          _
        $region24: #{tpu_custom_call.1} parent=11 // pred_fallthru
          _
      $region12: #{tpu_custom_call.1} parent=5 // pred_fallthru
        _
      %p176 = scmp.lt.s32.totalorder %s17, 2
      // Predicated region
      $region25: #{tpu_custom_call.1} parent=5 // pred_check
        %p177 = pneg %p176
      $region26: #{tpu_custom_call.1} parent=5 // pred_check_branch
        %179 = sbr.rel (%p177) target = $region28
      $region27: #{tpu_custom_call.1} parent=5 // pred_region
        // Predicated region
        $region29: #{tpu_custom_call.1} parent=27 // pred_check
          %p180 = pneg %p37
        $region30: #{tpu_custom_call.1} parent=27 // pred_check_branch
          %182 = sbr.rel (%p180) target = $region32
        $region31: #{tpu_custom_call.1} parent=27 // pred_region
          %s183 = sand.u32 %s27, 1
          %s184 = scalar_lea.sflag [#allocation3], %s183
          %s185 = sand.u32 %s27, 1
          %s186 = smul.addr %s185, 8
          %s187 = scalar_lea.vmem [#allocation2], %s186
          %s189 = ssub.s32 128, 128
          %190 = vsyncadd %s184, %s189
          %s191 = smul.addr %s17, 128
          %s192 = scalar_lea.hbm %s0, %s191
          %s194 = sshll.u32 %s187, 4
          %s195 = int_to_ptr.vmem [resolvable:$true] %s194
          %197 = dma.hbm_to_vmem [thread:$0]  %s192, 128, %s195, %s184
        $region32: #{tpu_custom_call.1} parent=27 // pred_fallthru
          _
      $region28: #{tpu_custom_call.1} parent=5 // pred_fallthru
        _
      %p198 = scmp.le.s32.totalorder 1, %s17
      %p199 = scmp.lt.s32.totalorder %s17, 3
      %p200 = pnand %p198, %p199
      %p201 = pneg %p200
      // Predicated region
      $region33: #{tpu_custom_call.1} parent=5 // pred_check
        _
      $region34: #{tpu_custom_call.1} parent=5 // pred_check_branch
        %203 = sbr.rel (%p200) target = $region36
      $region35: #{tpu_custom_call.1} parent=5 // pred_region
        %s204 = ssub.s32 %s17, 1
        %s205 = sand.u32 %s30, 1
        %s206 = scalar_lea.sflag [#allocation3], %s205
        %s207 = sand.u32 %s30, 1
        %s208 = smul.addr %s207, 8
        %s209 = scalar_lea.vmem [#allocation2], %s208
        // Predicated region
        $region37: #{tpu_custom_call.1} parent=35 // pred_check
          %p210 = pneg %p43
        $region38: #{tpu_custom_call.1} parent=35 // pred_check_branch
          %212 = sbr.rel (%p210) target = $region40
        $region39: #{tpu_custom_call.1} parent=35 // pred_region
          %213 = dma.done %s206, 128
        $region40: #{tpu_custom_call.1} parent=35 // pred_fallthru
          _
        // Predicated region
        $region41: #{tpu_custom_call.1} parent=35 // pred_check
          %p214 = pneg %p64
        $region42: #{tpu_custom_call.1} parent=35 // pred_check_branch
          %216 = sbr.rel (%p214) target = $region44
        $region43: #{tpu_custom_call.1} parent=35 // pred_region
          %217 = dma.done [#allocation6], 512
        $region44: #{tpu_custom_call.1} parent=35 // pred_fallthru
          _
        // Predicated region
        $region45: #{tpu_custom_call.1} parent=35 // pred_check
          %p218 = pneg %p85
        $region46: #{tpu_custom_call.1} parent=35 // pred_check_branch
          %220 = sbr.rel (%p218) target = $region48
        $region47: #{tpu_custom_call.1} parent=35 // pred_region
          %221 = dma.done [#allocation6], 512
        $region48: #{tpu_custom_call.1} parent=35 // pred_fallthru
          _
        %s222 = sand.u32 %s30, 1
        %s223 = scalar_lea.sflag [#allocation3], %s222
        %s224 = sand.u32 %s30, 1
        %s225 = smul.addr %s224, 8
        %s226 = scalar_lea.vmem [#allocation2], %s225
        %p227 = pneg %p43
        %p228 = pneg %p40
        %p229 = pneg %p64
        %p230 = pneg %p61
        %p231 = pneg %p85
        %p232 = pneg %p82
        %p233 = pneg %p106
        %p234 = pneg %p103
        %p235 = pneg %p132
        %p236 = pneg %p129
        %s237 = sand.u32 %s119, 1
        %s238 = scalar_lea.sflag [#allocation4], %s237
        %s239 = sand.u32 %s119, 1
        %s240 = smul.addr %s239, 8
        %s241 = scalar_lea.vmem [#allocation8], %s240
        %v242 = vld [vmem:[%s209] sm:$0xff]
        %v243 = vld [vmem:[#allocation5] sm:$0xff]
        %v244 = vld [vmem:[#allocation5 + $0x8] sm:$0xff]
        %v245 = vld [vmem:[#allocation5 + $0x10] sm:$0xff]
        %v246 = vld [vmem:[#allocation5 + $0x18] sm:$0xff]
        %vm247 = vcmask 261120
        %v249 = vsel %vm247, %v242, 0
        %251 = vmatprep.subr.mxu0 0.0
        %252 = vmatpush1.msra.mxu0 0.0
        %253 = vmatprep.subr.mxu0 0.0
        %254 = vmatpush1.msra.mxu0 0.0
        %255 = vmatprep.subr.mxu0 0.0
        %256 = vmatpush1.msra.mxu0 0.0
        %257 = vmatprep.subr.mxu0 0.0
        %258 = vmatpush1.msra.mxu0 0.0
        %259 = vmatprep.subr.mxu0 0.0
        %260 = vmatpush1.msra.mxu0 0.0
        %261 = vmatprep.subr.mxu0 0.0
        %262 = vmatpush1.msra.mxu0 0.0
        %263 = vmatprep.subr.mxu0 0.0
        %264 = vmatpush1.msra.mxu0 0.0
        %265 = vmatprep.subr.mxu0 0.0
        %266 = vmatpush1.msra.mxu0 0.0
        %267 = vmatprep.subr.mxu0 0.0
        %268 = vmatpush1.msra.mxu0 0.0
        %269 = vmatprep.subr.mxu0 0.0
        %270 = vmatpush1.msra.mxu0 0.0
        %271 = vmatprep.subr.mxu0 0.0
        %272 = vmatpush1.msra.mxu0 0.0
        %273 = vmatprep.subr.mxu0 0.0
        %274 = vmatpush1.msra.mxu0 0.0
        %275 = vmatprep.subr.mxu0 0.0
        %276 = vmatpush1.msra.mxu0 %v246
        %277 = vmatprep.subr.mxu0 0.0
        %278 = vmatpush1.msra.mxu0 %v245
        %279 = vmatprep.subr.mxu0 0.0
        %280 = vmatpush1.msra.mxu0 %v244
        %281 = vmatprep.subr.mxu0 0.0
        %282 = vmatpush1.msra.mxu0 %v243
        %283 = vmatprep.subr.mxu0 0.0
        %284 = vmatpush2.msra.mxu0 0.0
        %285 = vmatprep.subr.mxu0 0.0
        %286 = vmatpush2.msra.mxu0 0.0
        %287 = vmatprep.subr.mxu0 0.0
        %288 = vmatpush2.msra.mxu0 0.0
        %289 = vmatprep.subr.mxu0 0.0
        %290 = vmatpush2.msra.mxu0 0.0
        %291 = vmatprep.subr.mxu0 0.0
        %292 = vmatpush2.msra.mxu0 0.0
        %293 = vmatprep.subr.mxu0 0.0
        %294 = vmatpush2.msra.mxu0 0.0
        %295 = vmatprep.subr.mxu0 0.0
        %296 = vmatpush2.msra.mxu0 0.0
        %297 = vmatprep.subr.mxu0 0.0
        %298 = vmatpush2.msra.mxu0 0.0
        %299 = vmatprep.subr.mxu0 0.0
        %300 = vmatpush2.msra.mxu0 0.0
        %301 = vmatprep.subr.mxu0 0.0
        %302 = vmatpush2.msra.mxu0 0.0
        %303 = vmatprep.subr.mxu0 0.0
        %304 = vmatpush2.msra.mxu0 0.0
        %305 = vmatprep.subr.mxu0 0.0
        %306 = vmatpush2.msra.mxu0 0.0
        %307 = vmatprep.subr.mxu0 0.0
        %308 = vmatpush2.msra.mxu0 0.0
        %309 = vmatprep.subr.mxu0 0.0
        %310 = vmatpush2.msra.mxu0 0.0
        %311 = vmatprep.subr.mxu0 0.0
        %312 = vmatpush2.msra.mxu0 0.0
        %313 = vmatprep.subr.mxu0 0.0
        %314 = vmatpush2.msra.mxu0 0.0
        %315 = vmatprep.mubr.f32.mxu0 0.0
        %316 = vmatmul.mubr.f32.gmra.mxu0 %v249
        %v317 = vpop.f32.mrf.mxu0
        %v318 = vadd.f32 0.0, %v317
        %v319 = vpop.f32.mrf.mxu0
        %320 = vdwg.mxu0
        %322 = vrot.lane.b32.xlu0 %v318, 120
        %v323 = vpop.permute.xlu0 %322
        %325 = vrot.lane.b32.xlu0 %v318, 112
        %v326 = vpop.permute.xlu0 %325
        %328 = vrot.lane.b32.xlu0 %v318, 104
        %v329 = vpop.permute.xlu0 %328
        %v331 = vcombine.low %v318, %v326
        %v332 = vcombine.high %v318, %v326
        %v334 = vunpack.c.l.s4 1983009808
        %v335 = vunpack.c.0.s8 %v334
        %v336 = vlaneseq
        %v337 = vshrl.u32 %v336, 7
        %v338 = vsub.s32 %v335, %v337
        %v339 = vrot.slane %v331, %v338
        %v341 = vunpack.c.l.s4 1983009808
        %v342 = vunpack.c.0.s8 %v341
        %v343 = vlaneseq
        %v344 = vshrl.u32 %v343, 7
        %v345 = vsub.s32 %v342, %v344
        %v346 = vrot.slane %v332, %v345
        %v347 = vcombine.low %v323, %v329
        %v348 = vcombine.high %v323, %v329
        %v350 = vunpack.c.l.s4 1983009808
        %v351 = vunpack.c.0.s8 %v350
        %v352 = vlaneseq
        %v353 = vshrl.u32 %v352, 7
        %v354 = vsub.s32 %v351, %v353
        %v355 = vrot.slane %v347, %v354
        %v357 = vunpack.c.l.s4 1983009808
        %v358 = vunpack.c.0.s8 %v357
        %v359 = vlaneseq
        %v360 = vshrl.u32 %v359, 7
        %v361 = vsub.s32 %v358, %v360
        %v362 = vrot.slane %v348, %v361
        %v363 = vcombine.low %v339, %v355
        %v364 = vcombine.high %v339, %v355
        %v366 = vunpack.c.l.s4 1934713408
        %v367 = vunpack.c.0.s8 %v366
        %v368 = vlaneseq
        %v369 = vshrl.u32 %v368, 7
        %v370 = vsub.s32 %v367, %v369
        %v371 = vrot.slane %v363, %v370
        %v373 = vunpack.c.l.s4 1934713408
        %v374 = vunpack.c.0.s8 %v373
        %v375 = vlaneseq
        %v376 = vshrl.u32 %v375, 7
        %v377 = vsub.s32 %v374, %v376
        %v378 = vrot.slane %v364, %v377
        %v379 = vcombine.low %v346, %v362
        %v380 = vcombine.high %v346, %v362
        %v382 = vunpack.c.l.s4 1934713408
        %v383 = vunpack.c.0.s8 %v382
        %v384 = vlaneseq
        %v385 = vshrl.u32 %v384, 7
        %v386 = vsub.s32 %v383, %v385
        %v387 = vrot.slane %v379, %v386
        %v389 = vunpack.c.l.s4 1934713408
        %v390 = vunpack.c.0.s8 %v389
        %v391 = vlaneseq
        %v392 = vshrl.u32 %v391, 7
        %v393 = vsub.s32 %v390, %v392
        %v394 = vrot.slane %v380, %v393
        %v395 = vcombine.high %v371, 0.0
        %v396 = vcombine.high %v378, 0.0
        %v397 = vcombine.high %v387, 0.0
        %v398 = vcombine.high %v394, 0.0
        %v399 = vcombine.low %v371, %v378
        %v401 = vunpack.c.l.s4 1983009808
        %v402 = vunpack.c.0.s8 %v401
        %v403 = vlaneseq
        %v404 = vshrl.u32 %v403, 7
        %v405 = vsub.s32 %v402, %v404
        %v406 = vrot.slane %v399, %v405
        %v407 = vcombine.low %v395, %v396
        %v409 = vunpack.c.l.s4 1983009808
        %v410 = vunpack.c.0.s8 %v409
        %v411 = vlaneseq
        %v412 = vshrl.u32 %v411, 7
        %v413 = vsub.s32 %v410, %v412
        %v414 = vrot.slane %v407, %v413
        %v415 = vcombine.low %v387, %v394
        %v417 = vunpack.c.l.s4 1983009808
        %v418 = vunpack.c.0.s8 %v417
        %v419 = vlaneseq
        %v420 = vshrl.u32 %v419, 7
        %v421 = vsub.s32 %v418, %v420
        %v422 = vrot.slane %v415, %v421
        %v423 = vcombine.low %v397, %v398
        %v425 = vunpack.c.l.s4 1983009808
        %v426 = vunpack.c.0.s8 %v425
        %v427 = vlaneseq
        %v428 = vshrl.u32 %v427, 7
        %v429 = vsub.s32 %v426, %v428
        %v430 = vrot.slane %v423, %v429
        %v431 = vcombine.low %v406, %v414
        %v432 = vcombine.high %v406, %v414
        %v434 = vunpack.c.l.s4 1934713408
        %v435 = vunpack.c.0.s8 %v434
        %v436 = vlaneseq
        %v437 = vshrl.u32 %v436, 7
        %v438 = vsub.s32 %v435, %v437
        %v439 = vrot.slane %v431, %v438
        %v441 = vunpack.c.l.s4 1934713408
        %v442 = vunpack.c.0.s8 %v441
        %v443 = vlaneseq
        %v444 = vshrl.u32 %v443, 7
        %v445 = vsub.s32 %v442, %v444
        %v446 = vrot.slane %v432, %v445
        %v447 = vcombine.low %v422, %v430
        %v448 = vcombine.high %v422, %v430
        %v450 = vunpack.c.l.s4 1934713408
        %v451 = vunpack.c.0.s8 %v450
        %v452 = vlaneseq
        %v453 = vshrl.u32 %v452, 7
        %v454 = vsub.s32 %v451, %v453
        %v455 = vrot.slane %v447, %v454
        %v457 = vunpack.c.l.s4 1934713408
        %v458 = vunpack.c.0.s8 %v457
        %v459 = vlaneseq
        %v460 = vshrl.u32 %v459, 7
        %v461 = vsub.s32 %v458, %v460
        %v462 = vrot.slane %v448, %v461
        %v463 = vcombine.low %v439, %v455
        %v464 = vcombine.high %v439, %v455
        %v465 = vcombine.low %v446, %v462
        %v466 = vcombine.high %v446, %v462
        %467 = vrot.lane.b32.xlu0 %v318, 96
        %v468 = vpop.permute.xlu0 %467
        %469 = vrot.lane.b32.xlu0 %v323, 96
        %v470 = vpop.permute.xlu0 %469
        %471 = vrot.lane.b32.xlu0 %v326, 96
        %v472 = vpop.permute.xlu0 %471
        %473 = vrot.lane.b32.xlu0 %v329, 96
        %v474 = vpop.permute.xlu0 %473
        %v479 = vcombine.low %v468, %v472
        %v480 = vcombine.high %v468, %v472
        %v482 = vunpack.c.l.s4 1983009808
        %v483 = vunpack.c.0.s8 %v482
        %v484 = vlaneseq
        %v485 = vshrl.u32 %v484, 7
        %v486 = vsub.s32 %v483, %v485
        %v487 = vrot.slane %v479, %v486
        %v489 = vunpack.c.l.s4 1983009808
        %v490 = vunpack.c.0.s8 %v489
        %v491 = vlaneseq
        %v492 = vshrl.u32 %v491, 7
        %v493 = vsub.s32 %v490, %v492
        %v494 = vrot.slane %v480, %v493
        %v495 = vcombine.low %v470, %v474
        %v496 = vcombine.high %v470, %v474
        %v498 = vunpack.c.l.s4 1983009808
        %v499 = vunpack.c.0.s8 %v498
        %v500 = vlaneseq
        %v501 = vshrl.u32 %v500, 7
        %v502 = vsub.s32 %v499, %v501
        %v503 = vrot.slane %v495, %v502
        %v505 = vunpack.c.l.s4 1983009808
        %v506 = vunpack.c.0.s8 %v505
        %v507 = vlaneseq
        %v508 = vshrl.u32 %v507, 7
        %v509 = vsub.s32 %v506, %v508
        %v510 = vrot.slane %v496, %v509
        %v511 = vcombine.low %v487, %v503
        %v512 = vcombine.high %v487, %v503
        %v514 = vunpack.c.l.s4 1934713408
        %v515 = vunpack.c.0.s8 %v514
        %v516 = vlaneseq
        %v517 = vshrl.u32 %v516, 7
        %v518 = vsub.s32 %v515, %v517
        %v519 = vrot.slane %v511, %v518
        %v521 = vunpack.c.l.s4 1934713408
        %v522 = vunpack.c.0.s8 %v521
        %v523 = vlaneseq
        %v524 = vshrl.u32 %v523, 7
        %v525 = vsub.s32 %v522, %v524
        %v526 = vrot.slane %v512, %v525
        %v527 = vcombine.low %v494, %v510
        %v528 = vcombine.high %v494, %v510
        %v530 = vunpack.c.l.s4 1934713408
        %v531 = vunpack.c.0.s8 %v530
        %v532 = vlaneseq
        %v533 = vshrl.u32 %v532, 7
        %v534 = vsub.s32 %v531, %v533
        %v535 = vrot.slane %v527, %v534
        %v537 = vunpack.c.l.s4 1934713408
        %v538 = vunpack.c.0.s8 %v537
        %v539 = vlaneseq
        %v540 = vshrl.u32 %v539, 7
        %v541 = vsub.s32 %v538, %v540
        %v542 = vrot.slane %v528, %v541
        %v543 = vcombine.high %v519, 0.0
        %v544 = vcombine.high %v526, 0.0
        %v545 = vcombine.high %v535, 0.0
        %v546 = vcombine.high %v542, 0.0
        %v547 = vcombine.low %v519, %v526
        %v549 = vunpack.c.l.s4 1983009808
        %v550 = vunpack.c.0.s8 %v549
        %v551 = vlaneseq
        %v552 = vshrl.u32 %v551, 7
        %v553 = vsub.s32 %v550, %v552
        %v554 = vrot.slane %v547, %v553
        %v555 = vcombine.low %v543, %v544
        %v557 = vunpack.c.l.s4 1983009808
        %v558 = vunpack.c.0.s8 %v557
        %v559 = vlaneseq
        %v560 = vshrl.u32 %v559, 7
        %v561 = vsub.s32 %v558, %v560
        %v562 = vrot.slane %v555, %v561
        %v563 = vcombine.low %v535, %v542
        %v565 = vunpack.c.l.s4 1983009808
        %v566 = vunpack.c.0.s8 %v565
        %v567 = vlaneseq
        %v568 = vshrl.u32 %v567, 7
        %v569 = vsub.s32 %v566, %v568
        %v570 = vrot.slane %v563, %v569
        %v571 = vcombine.low %v545, %v546
        %v573 = vunpack.c.l.s4 1983009808
        %v574 = vunpack.c.0.s8 %v573
        %v575 = vlaneseq
        %v576 = vshrl.u32 %v575, 7
        %v577 = vsub.s32 %v574, %v576
        %v578 = vrot.slane %v571, %v577
        %v579 = vcombine.low %v554, %v562
        %v580 = vcombine.high %v554, %v562
        %v582 = vunpack.c.l.s4 1934713408
        %v583 = vunpack.c.0.s8 %v582
        %v584 = vlaneseq
        %v585 = vshrl.u32 %v584, 7
        %v586 = vsub.s32 %v583, %v585
        %v587 = vrot.slane %v579, %v586
        %v589 = vunpack.c.l.s4 1934713408
        %v590 = vunpack.c.0.s8 %v589
        %v591 = vlaneseq
        %v592 = vshrl.u32 %v591, 7
        %v593 = vsub.s32 %v590, %v592
        %v594 = vrot.slane %v580, %v593
        %v595 = vcombine.low %v570, %v578
        %v596 = vcombine.high %v570, %v578
        %v598 = vunpack.c.l.s4 1934713408
        %v599 = vunpack.c.0.s8 %v598
        %v600 = vlaneseq
        %v601 = vshrl.u32 %v600, 7
        %v602 = vsub.s32 %v599, %v601
        %v603 = vrot.slane %v595, %v602
        %v605 = vunpack.c.l.s4 1934713408
        %v606 = vunpack.c.0.s8 %v605
        %v607 = vlaneseq
        %v608 = vshrl.u32 %v607, 7
        %v609 = vsub.s32 %v606, %v608
        %v610 = vrot.slane %v596, %v609
        %v611 = vcombine.low %v587, %v603
        %v612 = vcombine.high %v587, %v603
        %v613 = vcombine.low %v594, %v610
        %v614 = vcombine.high %v594, %v610
        %615 = vrot.lane.b32.xlu0 %v318, 64
        %v616 = vpop.permute.xlu0 %615
        %617 = vrot.lane.b32.xlu0 %v323, 64
        %v618 = vpop.permute.xlu0 %617
        %619 = vrot.lane.b32.xlu0 %v326, 64
        %v620 = vpop.permute.xlu0 %619
        %621 = vrot.lane.b32.xlu0 %v329, 64
        %v622 = vpop.permute.xlu0 %621
        %v627 = vcombine.low %v616, %v620
        %v628 = vcombine.high %v616, %v620
        %v630 = vunpack.c.l.s4 1983009808
        %v631 = vunpack.c.0.s8 %v630
        %v632 = vlaneseq
        %v633 = vshrl.u32 %v632, 7
        %v634 = vsub.s32 %v631, %v633
        %v635 = vrot.slane %v627, %v634
        %v637 = vunpack.c.l.s4 1983009808
        %v638 = vunpack.c.0.s8 %v637
        %v639 = vlaneseq
        %v640 = vshrl.u32 %v639, 7
        %v641 = vsub.s32 %v638, %v640
        %v642 = vrot.slane %v628, %v641
        %v643 = vcombine.low %v618, %v622
        %v644 = vcombine.high %v618, %v622
        %v646 = vunpack.c.l.s4 1983009808
        %v647 = vunpack.c.0.s8 %v646
        %v648 = vlaneseq
        %v649 = vshrl.u32 %v648, 7
        %v650 = vsub.s32 %v647, %v649
        %v651 = vrot.slane %v643, %v650
        %v653 = vunpack.c.l.s4 1983009808
        %v654 = vunpack.c.0.s8 %v653
        %v655 = vlaneseq
        %v656 = vshrl.u32 %v655, 7
        %v657 = vsub.s32 %v654, %v656
        %v658 = vrot.slane %v644, %v657
        %v659 = vcombine.low %v635, %v651
        %v660 = vcombine.high %v635, %v651
        %v662 = vunpack.c.l.s4 1934713408
        %v663 = vunpack.c.0.s8 %v662
        %v664 = vlaneseq
        %v665 = vshrl.u32 %v664, 7
        %v666 = vsub.s32 %v663, %v665
        %v667 = vrot.slane %v659, %v666
        %v669 = vunpack.c.l.s4 1934713408
        %v670 = vunpack.c.0.s8 %v669
        %v671 = vlaneseq
        %v672 = vshrl.u32 %v671, 7
        %v673 = vsub.s32 %v670, %v672
        %v674 = vrot.slane %v660, %v673
        %v675 = vcombine.low %v642, %v658
        %v676 = vcombine.high %v642, %v658
        %v678 = vunpack.c.l.s4 1934713408
        %v679 = vunpack.c.0.s8 %v678
        %v680 = vlaneseq
        %v681 = vshrl.u32 %v680, 7
        %v682 = vsub.s32 %v679, %v681
        %v683 = vrot.slane %v675, %v682
        %v685 = vunpack.c.l.s4 1934713408
        %v686 = vunpack.c.0.s8 %v685
        %v687 = vlaneseq
        %v688 = vshrl.u32 %v687, 7
        %v689 = vsub.s32 %v686, %v688
        %v690 = vrot.slane %v676, %v689
        %v691 = vcombine.high %v667, 0.0
        %v692 = vcombine.high %v674, 0.0
        %v693 = vcombine.high %v683, 0.0
        %v694 = vcombine.high %v690, 0.0
        %v695 = vcombine.low %v667, %v674
        %v697 = vunpack.c.l.s4 1983009808
        %v698 = vunpack.c.0.s8 %v697
        %v699 = vlaneseq
        %v700 = vshrl.u32 %v699, 7
        %v701 = vsub.s32 %v698, %v700
        %v702 = vrot.slane %v695, %v701
        %v703 = vcombine.low %v691, %v692
        %v705 = vunpack.c.l.s4 1983009808
        %v706 = vunpack.c.0.s8 %v705
        %v707 = vlaneseq
        %v708 = vshrl.u32 %v707, 7
        %v709 = vsub.s32 %v706, %v708
        %v710 = vrot.slane %v703, %v709
        %v711 = vcombine.low %v683, %v690
        %v713 = vunpack.c.l.s4 1983009808
        %v714 = vunpack.c.0.s8 %v713
        %v715 = vlaneseq
        %v716 = vshrl.u32 %v715, 7
        %v717 = vsub.s32 %v714, %v716
        %v718 = vrot.slane %v711, %v717
        %v719 = vcombine.low %v693, %v694
        %v721 = vunpack.c.l.s4 1983009808
        %v722 = vunpack.c.0.s8 %v721
        %v723 = vlaneseq
        %v724 = vshrl.u32 %v723, 7
        %v725 = vsub.s32 %v722, %v724
        %v726 = vrot.slane %v719, %v725
        %v727 = vcombine.low %v702, %v710
        %v728 = vcombine.high %v702, %v710
        %v730 = vunpack.c.l.s4 1934713408
        %v731 = vunpack.c.0.s8 %v730
        %v732 = vlaneseq
        %v733 = vshrl.u32 %v732, 7
        %v734 = vsub.s32 %v731, %v733
        %v735 = vrot.slane %v727, %v734
        %v737 = vunpack.c.l.s4 1934713408
        %v738 = vunpack.c.0.s8 %v737
        %v739 = vlaneseq
        %v740 = vshrl.u32 %v739, 7
        %v741 = vsub.s32 %v738, %v740
        %v742 = vrot.slane %v728, %v741
        %v743 = vcombine.low %v718, %v726
        %v744 = vcombine.high %v718, %v726
        %v746 = vunpack.c.l.s4 1934713408
        %v747 = vunpack.c.0.s8 %v746
        %v748 = vlaneseq
        %v749 = vshrl.u32 %v748, 7
        %v750 = vsub.s32 %v747, %v749
        %v751 = vrot.slane %v743, %v750
        %v753 = vunpack.c.l.s4 1934713408
        %v754 = vunpack.c.0.s8 %v753
        %v755 = vlaneseq
        %v756 = vshrl.u32 %v755, 7
        %v757 = vsub.s32 %v754, %v756
        %v758 = vrot.slane %v744, %v757
        %v759 = vcombine.low %v735, %v751
        %v760 = vcombine.high %v735, %v751
        %v761 = vcombine.low %v742, %v758
        %v762 = vcombine.high %v742, %v758
        %vm763 = vcmask 64512
        %v765 = vsel %vm763, %v463, 0
        %v768 = vsel %vm763, %v611, 0
        %770 = vmatprep.subr.mxu0 0.0
        %771 = vmatpush1.xpose.msra.mxu0 0.0
        %772 = vmatprep.subr.mxu0 0.0
        %773 = vmatpush1.xpose.msra.mxu0 0.0
        %774 = vmatprep.subr.mxu0 0.0
        %775 = vmatpush1.xpose.msra.mxu0 0.0
        %776 = vmatprep.subr.mxu0 0.0
        %777 = vmatpush1.xpose.msra.mxu0 0.0
        %778 = vmatprep.subr.mxu0 0.0
        %779 = vmatpush1.xpose.msra.mxu0 0.0
        %780 = vmatprep.subr.mxu0 0.0
        %781 = vmatpush1.xpose.msra.mxu0 0.0
        %782 = vmatprep.subr.mxu0 0.0
        %783 = vmatpush1.xpose.msra.mxu0 0.0
        %784 = vmatprep.subr.mxu0 0.0
        %785 = vmatpush1.xpose.msra.mxu0 0.0
        %786 = vmatprep.subr.mxu0 0.0
        %787 = vmatpush1.xpose.msra.mxu0 0.0
        %788 = vmatprep.subr.mxu0 0.0
        %789 = vmatpush1.xpose.msra.mxu0 0.0
        %790 = vmatprep.subr.mxu0 0.0
        %791 = vmatpush1.xpose.msra.mxu0 0.0
        %792 = vmatprep.subr.mxu0 0.0
        %793 = vmatpush1.xpose.msra.mxu0 0.0
        %794 = vmatprep.subr.mxu0 0.0
        %795 = vmatpush1.xpose.msra.mxu0 0.0
        %796 = vmatprep.subr.mxu0 0.0
        %797 = vmatpush1.xpose.msra.mxu0 0.0
        %798 = vmatprep.subr.mxu0 0.0
        %799 = vmatpush1.xpose.msra.mxu0 0.0
        %800 = vmatprep.subr.mxu0 0.0
        %801 = vmatpush1.xpose.msra.mxu0 %v768
        %802 = vmatprep.subr.mxu0 0.0
        %803 = vmatpush2.xpose.msra.mxu0 0.0
        %804 = vmatprep.subr.mxu0 0.0
        %805 = vmatpush2.xpose.msra.mxu0 0.0
        %806 = vmatprep.subr.mxu0 0.0
        %807 = vmatpush2.xpose.msra.mxu0 0.0
        %808 = vmatprep.subr.mxu0 0.0
        %809 = vmatpush2.xpose.msra.mxu0 0.0
        %810 = vmatprep.subr.mxu0 0.0
        %811 = vmatpush2.xpose.msra.mxu0 0.0
        %812 = vmatprep.subr.mxu0 0.0
        %813 = vmatpush2.xpose.msra.mxu0 0.0
        %814 = vmatprep.subr.mxu0 0.0
        %815 = vmatpush2.xpose.msra.mxu0 0.0
        %816 = vmatprep.subr.mxu0 0.0
        %817 = vmatpush2.xpose.msra.mxu0 0.0
        %818 = vmatprep.subr.mxu0 0.0
        %819 = vmatpush2.xpose.msra.mxu0 0.0
        %820 = vmatprep.subr.mxu0 0.0
        %821 = vmatpush2.xpose.msra.mxu0 0.0
        %822 = vmatprep.subr.mxu0 0.0
        %823 = vmatpush2.xpose.msra.mxu0 0.0
        %824 = vmatprep.subr.mxu0 0.0
        %825 = vmatpush2.xpose.msra.mxu0 0.0
        %826 = vmatprep.subr.mxu0 0.0
        %827 = vmatpush2.xpose.msra.mxu0 0.0
        %828 = vmatprep.subr.mxu0 0.0
        %829 = vmatpush2.xpose.msra.mxu0 0.0
        %830 = vmatprep.subr.mxu0 0.0
        %831 = vmatpush2.xpose.msra.mxu0 0.0
        %832 = vmatprep.subr.mxu0 0.0
        %833 = vmatpush2.xpose.msra.mxu0 0.0
        %834 = vmatprep.mubr.f32.mxu0 0.0
        %835 = vmatmul.mubr.f32.gmra.mxu0 %v765
        %v836 = vpop.f32.mrf.mxu0
        %v837 = vadd.f32 0.0, %v836
        %v838 = vpop.f32.mrf.mxu0
        %839 = vdwg.mxu0
        %v841 = vsel %vm763, %v464, 0
        %v844 = vsel %vm763, %v612, 0
        %846 = vmatprep.subr.mxu0 0.0
        %847 = vmatpush1.xpose.msra.mxu0 0.0
        %848 = vmatprep.subr.mxu0 0.0
        %849 = vmatpush1.xpose.msra.mxu0 0.0
        %850 = vmatprep.subr.mxu0 0.0
        %851 = vmatpush1.xpose.msra.mxu0 0.0
        %852 = vmatprep.subr.mxu0 0.0
        %853 = vmatpush1.xpose.msra.mxu0 0.0
        %854 = vmatprep.subr.mxu0 0.0
        %855 = vmatpush1.xpose.msra.mxu0 0.0
        %856 = vmatprep.subr.mxu0 0.0
        %857 = vmatpush1.xpose.msra.mxu0 0.0
        %858 = vmatprep.subr.mxu0 0.0
        %859 = vmatpush1.xpose.msra.mxu0 0.0
        %860 = vmatprep.subr.mxu0 0.0
        %861 = vmatpush1.xpose.msra.mxu0 0.0
        %862 = vmatprep.subr.mxu0 0.0
        %863 = vmatpush1.xpose.msra.mxu0 0.0
        %864 = vmatprep.subr.mxu0 0.0
        %865 = vmatpush1.xpose.msra.mxu0 0.0
        %866 = vmatprep.subr.mxu0 0.0
        %867 = vmatpush1.xpose.msra.mxu0 0.0
        %868 = vmatprep.subr.mxu0 0.0
        %869 = vmatpush1.xpose.msra.mxu0 0.0
        %870 = vmatprep.subr.mxu0 0.0
        %871 = vmatpush1.xpose.msra.mxu0 0.0
        %872 = vmatprep.subr.mxu0 0.0
        %873 = vmatpush1.xpose.msra.mxu0 0.0
        %874 = vmatprep.subr.mxu0 0.0
        %875 = vmatpush1.xpose.msra.mxu0 0.0
        %876 = vmatprep.subr.mxu0 0.0
        %877 = vmatpush1.xpose.msra.mxu0 %v844
        %878 = vmatprep.subr.mxu0 0.0
        %879 = vmatpush2.xpose.msra.mxu0 0.0
        %880 = vmatprep.subr.mxu0 0.0
        %881 = vmatpush2.xpose.msra.mxu0 0.0
        %882 = vmatprep.subr.mxu0 0.0
        %883 = vmatpush2.xpose.msra.mxu0 0.0
        %884 = vmatprep.subr.mxu0 0.0
        %885 = vmatpush2.xpose.msra.mxu0 0.0
        %886 = vmatprep.subr.mxu0 0.0
        %887 = vmatpush2.xpose.msra.mxu0 0.0
        %888 = vmatprep.subr.mxu0 0.0
        %889 = vmatpush2.xpose.msra.mxu0 0.0
        %890 = vmatprep.subr.mxu0 0.0
        %891 = vmatpush2.xpose.msra.mxu0 0.0
        %892 = vmatprep.subr.mxu0 0.0
        %893 = vmatpush2.xpose.msra.mxu0 0.0
        %894 = vmatprep.subr.mxu0 0.0
        %895 = vmatpush2.xpose.msra.mxu0 0.0
        %896 = vmatprep.subr.mxu0 0.0
        %897 = vmatpush2.xpose.msra.mxu0 0.0
        %898 = vmatprep.subr.mxu0 0.0
        %899 = vmatpush2.xpose.msra.mxu0 0.0
        %900 = vmatprep.subr.mxu0 0.0
        %901 = vmatpush2.xpose.msra.mxu0 0.0
        %902 = vmatprep.subr.mxu0 0.0
        %903 = vmatpush2.xpose.msra.mxu0 0.0
        %904 = vmatprep.subr.mxu0 0.0
        %905 = vmatpush2.xpose.msra.mxu0 0.0
        %906 = vmatprep.subr.mxu0 0.0
        %907 = vmatpush2.xpose.msra.mxu0 0.0
        %908 = vmatprep.subr.mxu0 0.0
        %909 = vmatpush2.xpose.msra.mxu0 0.0
        %910 = vmatprep.mubr.f32.mxu0 0.0
        %911 = vmatmul.mubr.f32.gmra.mxu0 %v841
        %v912 = vpop.f32.mrf.mxu0
        %v913 = vadd.f32 0.0, %v912
        %v914 = vpop.f32.mrf.mxu0
        %915 = vdwg.mxu0
        %v917 = vsel %vm763, %v465, 0
        %v920 = vsel %vm763, %v613, 0
        %922 = vmatprep.subr.mxu0 0.0
        %923 = vmatpush1.xpose.msra.mxu0 0.0
        %924 = vmatprep.subr.mxu0 0.0
        %925 = vmatpush1.xpose.msra.mxu0 0.0
        %926 = vmatprep.subr.mxu0 0.0
        %927 = vmatpush1.xpose.msra.mxu0 0.0
        %928 = vmatprep.subr.mxu0 0.0
        %929 = vmatpush1.xpose.msra.mxu0 0.0
        %930 = vmatprep.subr.mxu0 0.0
        %931 = vmatpush1.xpose.msra.mxu0 0.0
        %932 = vmatprep.subr.mxu0 0.0
        %933 = vmatpush1.xpose.msra.mxu0 0.0
        %934 = vmatprep.subr.mxu0 0.0
        %935 = vmatpush1.xpose.msra.mxu0 0.0
        %936 = vmatprep.subr.mxu0 0.0
        %937 = vmatpush1.xpose.msra.mxu0 0.0
        %938 = vmatprep.subr.mxu0 0.0
        %939 = vmatpush1.xpose.msra.mxu0 0.0
        %940 = vmatprep.subr.mxu0 0.0
        %941 = vmatpush1.xpose.msra.mxu0 0.0
        %942 = vmatprep.subr.mxu0 0.0
        %943 = vmatpush1.xpose.msra.mxu0 0.0
        %944 = vmatprep.subr.mxu0 0.0
        %945 = vmatpush1.xpose.msra.mxu0 0.0
        %946 = vmatprep.subr.mxu0 0.0
        %947 = vmatpush1.xpose.msra.mxu0 0.0
        %948 = vmatprep.subr.mxu0 0.0
        %949 = vmatpush1.xpose.msra.mxu0 0.0
        %950 = vmatprep.subr.mxu0 0.0
        %951 = vmatpush1.xpose.msra.mxu0 0.0
        %952 = vmatprep.subr.mxu0 0.0
        %953 = vmatpush1.xpose.msra.mxu0 %v920
        %954 = vmatprep.subr.mxu0 0.0
        %955 = vmatpush2.xpose.msra.mxu0 0.0
        %956 = vmatprep.subr.mxu0 0.0
        %957 = vmatpush2.xpose.msra.mxu0 0.0
        %958 = vmatprep.subr.mxu0 0.0
        %959 = vmatpush2.xpose.msra.mxu0 0.0
        %960 = vmatprep.subr.mxu0 0.0
        %961 = vmatpush2.xpose.msra.mxu0 0.0
        %962 = vmatprep.subr.mxu0 0.0
        %963 = vmatpush2.xpose.msra.mxu0 0.0
        %964 = vmatprep.subr.mxu0 0.0
        %965 = vmatpush2.xpose.msra.mxu0 0.0
        %966 = vmatprep.subr.mxu0 0.0
        %967 = vmatpush2.xpose.msra.mxu0 0.0
        %968 = vmatprep.subr.mxu0 0.0
        %969 = vmatpush2.xpose.msra.mxu0 0.0
        %970 = vmatprep.subr.mxu0 0.0
        %971 = vmatpush2.xpose.msra.mxu0 0.0
        %972 = vmatprep.subr.mxu0 0.0
        %973 = vmatpush2.xpose.msra.mxu0 0.0
        %974 = vmatprep.subr.mxu0 0.0
        %975 = vmatpush2.xpose.msra.mxu0 0.0
        %976 = vmatprep.subr.mxu0 0.0
        %977 = vmatpush2.xpose.msra.mxu0 0.0
        %978 = vmatprep.subr.mxu0 0.0
        %979 = vmatpush2.xpose.msra.mxu0 0.0
        %980 = vmatprep.subr.mxu0 0.0
        %981 = vmatpush2.xpose.msra.mxu0 0.0
        %982 = vmatprep.subr.mxu0 0.0
        %983 = vmatpush2.xpose.msra.mxu0 0.0
        %984 = vmatprep.subr.mxu0 0.0
        %985 = vmatpush2.xpose.msra.mxu0 0.0
        %986 = vmatprep.mubr.f32.mxu0 0.0
        %987 = vmatmul.mubr.f32.gmra.mxu0 %v917
        %v988 = vpop.f32.mrf.mxu0
        %v989 = vadd.f32 0.0, %v988
        %v990 = vpop.f32.mrf.mxu0
        %991 = vdwg.mxu0
        %v993 = vsel %vm763, %v466, 0
        %v996 = vsel %vm763, %v614, 0
        %998 = vmatprep.subr.mxu0 0.0
        %999 = vmatpush1.xpose.msra.mxu0 0.0
        %1000 = vmatprep.subr.mxu0 0.0
        %1001 = vmatpush1.xpose.msra.mxu0 0.0
        %1002 = vmatprep.subr.mxu0 0.0
        %1003 = vmatpush1.xpose.msra.mxu0 0.0
        %1004 = vmatprep.subr.mxu0 0.0
        %1005 = vmatpush1.xpose.msra.mxu0 0.0
        %1006 = vmatprep.subr.mxu0 0.0
        %1007 = vmatpush1.xpose.msra.mxu0 0.0
        %1008 = vmatprep.subr.mxu0 0.0
        %1009 = vmatpush1.xpose.msra.mxu0 0.0
        %1010 = vmatprep.subr.mxu0 0.0
        %1011 = vmatpush1.xpose.msra.mxu0 0.0
        %1012 = vmatprep.subr.mxu0 0.0
        %1013 = vmatpush1.xpose.msra.mxu0 0.0
        %1014 = vmatprep.subr.mxu0 0.0
        %1015 = vmatpush1.xpose.msra.mxu0 0.0
        %1016 = vmatprep.subr.mxu0 0.0
        %1017 = vmatpush1.xpose.msra.mxu0 0.0
        %1018 = vmatprep.subr.mxu0 0.0
        %1019 = vmatpush1.xpose.msra.mxu0 0.0
        %1020 = vmatprep.subr.mxu0 0.0
        %1021 = vmatpush1.xpose.msra.mxu0 0.0
        %1022 = vmatprep.subr.mxu0 0.0
        %1023 = vmatpush1.xpose.msra.mxu0 0.0
        %1024 = vmatprep.subr.mxu0 0.0
        %1025 = vmatpush1.xpose.msra.mxu0 0.0
        %1026 = vmatprep.subr.mxu0 0.0
        %1027 = vmatpush1.xpose.msra.mxu0 0.0
        %1028 = vmatprep.subr.mxu0 0.0
        %1029 = vmatpush1.xpose.msra.mxu0 %v996
        %1030 = vmatprep.subr.mxu0 0.0
        %1031 = vmatpush2.xpose.msra.mxu0 0.0
        %1032 = vmatprep.subr.mxu0 0.0
        %1033 = vmatpush2.xpose.msra.mxu0 0.0
        %1034 = vmatprep.subr.mxu0 0.0
        %1035 = vmatpush2.xpose.msra.mxu0 0.0
        %1036 = vmatprep.subr.mxu0 0.0
        %1037 = vmatpush2.xpose.msra.mxu0 0.0
        %1038 = vmatprep.subr.mxu0 0.0
        %1039 = vmatpush2.xpose.msra.mxu0 0.0
        %1040 = vmatprep.subr.mxu0 0.0
        %1041 = vmatpush2.xpose.msra.mxu0 0.0
        %1042 = vmatprep.subr.mxu0 0.0
        %1043 = vmatpush2.xpose.msra.mxu0 0.0
        %1044 = vmatprep.subr.mxu0 0.0
        %1045 = vmatpush2.xpose.msra.mxu0 0.0
        %1046 = vmatprep.subr.mxu0 0.0
        %1047 = vmatpush2.xpose.msra.mxu0 0.0
        %1048 = vmatprep.subr.mxu0 0.0
        %1049 = vmatpush2.xpose.msra.mxu0 0.0
        %1050 = vmatprep.subr.mxu0 0.0
        %1051 = vmatpush2.xpose.msra.mxu0 0.0
        %1052 = vmatprep.subr.mxu0 0.0
        %1053 = vmatpush2.xpose.msra.mxu0 0.0
        %1054 = vmatprep.subr.mxu0 0.0
        %1055 = vmatpush2.xpose.msra.mxu0 0.0
        %1056 = vmatprep.subr.mxu0 0.0
        %1057 = vmatpush2.xpose.msra.mxu0 0.0
        %1058 = vmatprep.subr.mxu0 0.0
        %1059 = vmatpush2.xpose.msra.mxu0 0.0
        %1060 = vmatprep.subr.mxu0 0.0
        %1061 = vmatpush2.xpose.msra.mxu0 0.0
        %1062 = vmatprep.mubr.f32.mxu0 0.0
        %1063 = vmatmul.mubr.f32.gmra.mxu0 %v993
        %v1064 = vpop.f32.mrf.mxu0
        %v1065 = vadd.f32 0.0, %v1064
        %v1066 = vpop.f32.mrf.mxu0
        %1067 = vdwg.mxu0
        %v1068 = vlaneseq
        %v1069 = vshrl.u32 %v1068, 7
        %v1070 = vlaneseq
        %v1071 = vand.u32 %v1070, 127
        %vm1072 = vcmp.ge.s32.totalorder %v1069, %v1071
        %v1073 = vsel %vm1072, 1, 0
        %vm1074 = vcmp.eq.s32.totalorder %v1073, 1
        %v1075 = vsel %vm1074, %v837, -1e+30
        %v1076 = vsel %vm1074, %v913, -1e+30
        %v1077 = vsel %vm1074, %v989, -1e+30
        %v1078 = vsel %vm1074, %v1065, -1e+30
        %v1079 = vsel %vm763, %v1075, -inf
        %1080 = vmax.xlane.f32.xlu0 %v1079
        %v1081 = vpop.xlane.xlu0 %1080
        %v1082 = vsel %vm763, %v1076, -inf
        %1083 = vmax.xlane.f32.xlu0 %v1082
        %v1084 = vpop.xlane.xlu0 %1083
        %v1085 = vsel %vm763, %v1077, -inf
        %1086 = vmax.xlane.f32.xlu0 %v1085
        %v1087 = vpop.xlane.xlu0 %1086
        %v1088 = vsel %vm763, %v1078, -inf
        %1089 = vmax.xlane.f32.xlu0 %v1088
        %v1090 = vpop.xlane.xlu0 %1089
        %v1091 = vsub.f32 %v1075, %v1081
        %v1092 = vsub.f32 %v1076, %v1084
        %v1093 = vsub.f32 %v1077, %v1087
        %v1094 = vsub.f32 %v1078, %v1090
        %v1095 = vmul.f32 %v1091, 1.442695
        %v1096 = vpow.pop %v1095
        %v1097 = vmul.f32 %v1092, 1.442695
        %v1098 = vpow.pop %v1097
        %v1099 = vmul.f32 %v1093, 1.442695
        %v1100 = vpow.pop %v1099
        %v1101 = vmul.f32 %v1094, 1.442695
        %v1102 = vpow.pop %v1101
        %v1103 = vsel %vm763, %v1096, 0.0
        %1104 = vadd.xlane.f32.xlu0 %v1103
        %v1105 = vpop.xlane.xlu0 %1104
        %v1106 = vsel %vm763, %v1098, 0.0
        %1107 = vadd.xlane.f32.xlu0 %v1106
        %v1108 = vpop.xlane.xlu0 %1107
        %v1109 = vsel %vm763, %v1100, 0.0
        %1110 = vadd.xlane.f32.xlu0 %v1109
        %v1111 = vpop.xlane.xlu0 %1110
        %v1112 = vsel %vm763, %v1102, 0.0
        %1113 = vadd.xlane.f32.xlu0 %v1112
        %v1114 = vpop.xlane.xlu0 %1113
        %v1116 = vsel %vm763, %v1096, 0
        %1118 = vmatprep.subr.mxu0 0.0
        %1119 = vmatpush1.msra.mxu0 0.0
        %1120 = vmatprep.subr.mxu0 0.0
        %1121 = vmatpush1.msra.mxu0 0.0
        %1122 = vmatprep.subr.mxu0 0.0
        %1123 = vmatpush1.msra.mxu0 0.0
        %1124 = vmatprep.subr.mxu0 0.0
        %1125 = vmatpush1.msra.mxu0 0.0
        %1126 = vmatprep.subr.mxu0 0.0
        %1127 = vmatpush1.msra.mxu0 0.0
        %1128 = vmatprep.subr.mxu0 0.0
        %1129 = vmatpush1.msra.mxu0 0.0
        %1130 = vmatprep.subr.mxu0 0.0
        %1131 = vmatpush1.msra.mxu0 0.0
        %1132 = vmatprep.subr.mxu0 0.0
        %1133 = vmatpush1.msra.mxu0 0.0
        %1134 = vmatprep.subr.mxu0 0.0
        %1135 = vmatpush1.msra.mxu0 0.0
        %1136 = vmatprep.subr.mxu0 0.0
        %1137 = vmatpush1.msra.mxu0 0.0
        %1138 = vmatprep.subr.mxu0 0.0
        %1139 = vmatpush1.msra.mxu0 0.0
        %1140 = vmatprep.subr.mxu0 0.0
        %1141 = vmatpush1.msra.mxu0 0.0
        %1142 = vmatprep.subr.mxu0 0.0
        %1143 = vmatpush1.msra.mxu0 0.0
        %1144 = vmatprep.subr.mxu0 0.0
        %1145 = vmatpush1.msra.mxu0 0.0
        %1146 = vmatprep.subr.mxu0 0.0
        %1147 = vmatpush1.msra.mxu0 0.0
        %1148 = vmatprep.subr.mxu0 0.0
        %1149 = vmatpush1.msra.mxu0 %v759
        %1150 = vmatprep.subr.mxu0 0.0
        %1151 = vmatpush2.msra.mxu0 0.0
        %1152 = vmatprep.subr.mxu0 0.0
        %1153 = vmatpush2.msra.mxu0 0.0
        %1154 = vmatprep.subr.mxu0 0.0
        %1155 = vmatpush2.msra.mxu0 0.0
        %1156 = vmatprep.subr.mxu0 0.0
        %1157 = vmatpush2.msra.mxu0 0.0
        %1158 = vmatprep.subr.mxu0 0.0
        %1159 = vmatpush2.msra.mxu0 0.0
        %1160 = vmatprep.subr.mxu0 0.0
        %1161 = vmatpush2.msra.mxu0 0.0
        %1162 = vmatprep.subr.mxu0 0.0
        %1163 = vmatpush2.msra.mxu0 0.0
        %1164 = vmatprep.subr.mxu0 0.0
        %1165 = vmatpush2.msra.mxu0 0.0
        %1166 = vmatprep.subr.mxu0 0.0
        %1167 = vmatpush2.msra.mxu0 0.0
        %1168 = vmatprep.subr.mxu0 0.0
        %1169 = vmatpush2.msra.mxu0 0.0
        %1170 = vmatprep.subr.mxu0 0.0
        %1171 = vmatpush2.msra.mxu0 0.0
        %1172 = vmatprep.subr.mxu0 0.0
        %1173 = vmatpush2.msra.mxu0 0.0
        %1174 = vmatprep.subr.mxu0 0.0
        %1175 = vmatpush2.msra.mxu0 0.0
        %1176 = vmatprep.subr.mxu0 0.0
        %1177 = vmatpush2.msra.mxu0 0.0
        %1178 = vmatprep.subr.mxu0 0.0
        %1179 = vmatpush2.msra.mxu0 0.0
        %1180 = vmatprep.subr.mxu0 0.0
        %1181 = vmatpush2.msra.mxu0 0.0
        %1182 = vmatprep.mubr.f32.mxu0 0.0
        %1183 = vmatmul.mubr.f32.gmra.mxu0 %v1116
        %v1184 = vpop.f32.mrf.mxu0
        %v1185 = vadd.f32 0.0, %v1184
        %v1186 = vpop.f32.mrf.mxu0
        %1187 = vdwg.mxu0
        %v1189 = vsel %vm763, %v1098, 0
        %1191 = vmatprep.subr.mxu0 0.0
        %1192 = vmatpush1.msra.mxu0 0.0
        %1193 = vmatprep.subr.mxu0 0.0
        %1194 = vmatpush1.msra.mxu0 0.0
        %1195 = vmatprep.subr.mxu0 0.0
        %1196 = vmatpush1.msra.mxu0 0.0
        %1197 = vmatprep.subr.mxu0 0.0
        %1198 = vmatpush1.msra.mxu0 0.0
        %1199 = vmatprep.subr.mxu0 0.0
        %1200 = vmatpush1.msra.mxu0 0.0
        %1201 = vmatprep.subr.mxu0 0.0
        %1202 = vmatpush1.msra.mxu0 0.0
        %1203 = vmatprep.subr.mxu0 0.0
        %1204 = vmatpush1.msra.mxu0 0.0
        %1205 = vmatprep.subr.mxu0 0.0
        %1206 = vmatpush1.msra.mxu0 0.0
        %1207 = vmatprep.subr.mxu0 0.0
        %1208 = vmatpush1.msra.mxu0 0.0
        %1209 = vmatprep.subr.mxu0 0.0
        %1210 = vmatpush1.msra.mxu0 0.0
        %1211 = vmatprep.subr.mxu0 0.0
        %1212 = vmatpush1.msra.mxu0 0.0
        %1213 = vmatprep.subr.mxu0 0.0
        %1214 = vmatpush1.msra.mxu0 0.0
        %1215 = vmatprep.subr.mxu0 0.0
        %1216 = vmatpush1.msra.mxu0 0.0
        %1217 = vmatprep.subr.mxu0 0.0
        %1218 = vmatpush1.msra.mxu0 0.0
        %1219 = vmatprep.subr.mxu0 0.0
        %1220 = vmatpush1.msra.mxu0 0.0
        %1221 = vmatprep.subr.mxu0 0.0
        %1222 = vmatpush1.msra.mxu0 %v760
        %1223 = vmatprep.subr.mxu0 0.0
        %1224 = vmatpush2.msra.mxu0 0.0
        %1225 = vmatprep.subr.mxu0 0.0
        %1226 = vmatpush2.msra.mxu0 0.0
        %1227 = vmatprep.subr.mxu0 0.0
        %1228 = vmatpush2.msra.mxu0 0.0
        %1229 = vmatprep.subr.mxu0 0.0
        %1230 = vmatpush2.msra.mxu0 0.0
        %1231 = vmatprep.subr.mxu0 0.0
        %1232 = vmatpush2.msra.mxu0 0.0
        %1233 = vmatprep.subr.mxu0 0.0
        %1234 = vmatpush2.msra.mxu0 0.0
        %1235 = vmatprep.subr.mxu0 0.0
        %1236 = vmatpush2.msra.mxu0 0.0
        %1237 = vmatprep.subr.mxu0 0.0
        %1238 = vmatpush2.msra.mxu0 0.0
        %1239 = vmatprep.subr.mxu0 0.0
        %1240 = vmatpush2.msra.mxu0 0.0
        %1241 = vmatprep.subr.mxu0 0.0
        %1242 = vmatpush2.msra.mxu0 0.0
        %1243 = vmatprep.subr.mxu0 0.0
        %1244 = vmatpush2.msra.mxu0 0.0
        %1245 = vmatprep.subr.mxu0 0.0
        %1246 = vmatpush2.msra.mxu0 0.0
        %1247 = vmatprep.subr.mxu0 0.0
        %1248 = vmatpush2.msra.mxu0 0.0
        %1249 = vmatprep.subr.mxu0 0.0
        %1250 = vmatpush2.msra.mxu0 0.0
        %1251 = vmatprep.subr.mxu0 0.0
        %1252 = vmatpush2.msra.mxu0 0.0
        %1253 = vmatprep.subr.mxu0 0.0
        %1254 = vmatpush2.msra.mxu0 0.0
        %1255 = vmatprep.mubr.f32.mxu0 0.0
        %1256 = vmatmul.mubr.f32.gmra.mxu0 %v1189
        %v1257 = vpop.f32.mrf.mxu0
        %v1258 = vadd.f32 0.0, %v1257
        %v1259 = vpop.f32.mrf.mxu0
        %1260 = vdwg.mxu0
        %v1262 = vsel %vm763, %v1100, 0
        %1264 = vmatprep.subr.mxu0 0.0
        %1265 = vmatpush1.msra.mxu0 0.0
        %1266 = vmatprep.subr.mxu0 0.0
        %1267 = vmatpush1.msra.mxu0 0.0
        %1268 = vmatprep.subr.mxu0 0.0
        %1269 = vmatpush1.msra.mxu0 0.0
        %1270 = vmatprep.subr.mxu0 0.0
        %1271 = vmatpush1.msra.mxu0 0.0
        %1272 = vmatprep.subr.mxu0 0.0
        %1273 = vmatpush1.msra.mxu0 0.0
        %1274 = vmatprep.subr.mxu0 0.0
        %1275 = vmatpush1.msra.mxu0 0.0
        %1276 = vmatprep.subr.mxu0 0.0
        %1277 = vmatpush1.msra.mxu0 0.0
        %1278 = vmatprep.subr.mxu0 0.0
        %1279 = vmatpush1.msra.mxu0 0.0
        %1280 = vmatprep.subr.mxu0 0.0
        %1281 = vmatpush1.msra.mxu0 0.0
        %1282 = vmatprep.subr.mxu0 0.0
        %1283 = vmatpush1.msra.mxu0 0.0
        %1284 = vmatprep.subr.mxu0 0.0
        %1285 = vmatpush1.msra.mxu0 0.0
        %1286 = vmatprep.subr.mxu0 0.0
        %1287 = vmatpush1.msra.mxu0 0.0
        %1288 = vmatprep.subr.mxu0 0.0
        %1289 = vmatpush1.msra.mxu0 0.0
        %1290 = vmatprep.subr.mxu0 0.0
        %1291 = vmatpush1.msra.mxu0 0.0
        %1292 = vmatprep.subr.mxu0 0.0
        %1293 = vmatpush1.msra.mxu0 0.0
        %1294 = vmatprep.subr.mxu0 0.0
        %1295 = vmatpush1.msra.mxu0 %v761
        %1296 = vmatprep.subr.mxu0 0.0
        %1297 = vmatpush2.msra.mxu0 0.0
        %1298 = vmatprep.subr.mxu0 0.0
        %1299 = vmatpush2.msra.mxu0 0.0
        %1300 = vmatprep.subr.mxu0 0.0
        %1301 = vmatpush2.msra.mxu0 0.0
        %1302 = vmatprep.subr.mxu0 0.0
        %1303 = vmatpush2.msra.mxu0 0.0
        %1304 = vmatprep.subr.mxu0 0.0
        %1305 = vmatpush2.msra.mxu0 0.0
        %1306 = vmatprep.subr.mxu0 0.0
        %1307 = vmatpush2.msra.mxu0 0.0
        %1308 = vmatprep.subr.mxu0 0.0
        %1309 = vmatpush2.msra.mxu0 0.0
        %1310 = vmatprep.subr.mxu0 0.0
        %1311 = vmatpush2.msra.mxu0 0.0
        %1312 = vmatprep.subr.mxu0 0.0
        %1313 = vmatpush2.msra.mxu0 0.0
        %1314 = vmatprep.subr.mxu0 0.0
        %1315 = vmatpush2.msra.mxu0 0.0
        %1316 = vmatprep.subr.mxu0 0.0
        %1317 = vmatpush2.msra.mxu0 0.0
        %1318 = vmatprep.subr.mxu0 0.0
        %1319 = vmatpush2.msra.mxu0 0.0
        %1320 = vmatprep.subr.mxu0 0.0
        %1321 = vmatpush2.msra.mxu0 0.0
        %1322 = vmatprep.subr.mxu0 0.0
        %1323 = vmatpush2.msra.mxu0 0.0
        %1324 = vmatprep.subr.mxu0 0.0
        %1325 = vmatpush2.msra.mxu0 0.0
        %1326 = vmatprep.subr.mxu0 0.0
        %1327 = vmatpush2.msra.mxu0 0.0
        %1328 = vmatprep.mubr.f32.mxu0 0.0
        %1329 = vmatmul.mubr.f32.gmra.mxu0 %v1262
        %v1330 = vpop.f32.mrf.mxu0
        %v1331 = vadd.f32 0.0, %v1330
        %v1332 = vpop.f32.mrf.mxu0
        %1333 = vdwg.mxu0
        %v1335 = vsel %vm763, %v1102, 0
        %1337 = vmatprep.subr.mxu0 0.0
        %1338 = vmatpush1.msra.mxu0 0.0
        %1339 = vmatprep.subr.mxu0 0.0
        %1340 = vmatpush1.msra.mxu0 0.0
        %1341 = vmatprep.subr.mxu0 0.0
        %1342 = vmatpush1.msra.mxu0 0.0
        %1343 = vmatprep.subr.mxu0 0.0
        %1344 = vmatpush1.msra.mxu0 0.0
        %1345 = vmatprep.subr.mxu0 0.0
        %1346 = vmatpush1.msra.mxu0 0.0
        %1347 = vmatprep.subr.mxu0 0.0
        %1348 = vmatpush1.msra.mxu0 0.0
        %1349 = vmatprep.subr.mxu0 0.0
        %1350 = vmatpush1.msra.mxu0 0.0
        %1351 = vmatprep.subr.mxu0 0.0
        %1352 = vmatpush1.msra.mxu0 0.0
        %1353 = vmatprep.subr.mxu0 0.0
        %1354 = vmatpush1.msra.mxu0 0.0
        %1355 = vmatprep.subr.mxu0 0.0
        %1356 = vmatpush1.msra.mxu0 0.0
        %1357 = vmatprep.subr.mxu0 0.0
        %1358 = vmatpush1.msra.mxu0 0.0
        %1359 = vmatprep.subr.mxu0 0.0
        %1360 = vmatpush1.msra.mxu0 0.0
        %1361 = vmatprep.subr.mxu0 0.0
        %1362 = vmatpush1.msra.mxu0 0.0
        %1363 = vmatprep.subr.mxu0 0.0
        %1364 = vmatpush1.msra.mxu0 0.0
        %1365 = vmatprep.subr.mxu0 0.0
        %1366 = vmatpush1.msra.mxu0 0.0
        %1367 = vmatprep.subr.mxu0 0.0
        %1368 = vmatpush1.msra.mxu0 %v762
        %1369 = vmatprep.subr.mxu0 0.0
        %1370 = vmatpush2.msra.mxu0 0.0
        %1371 = vmatprep.subr.mxu0 0.0
        %1372 = vmatpush2.msra.mxu0 0.0
        %1373 = vmatprep.subr.mxu0 0.0
        %1374 = vmatpush2.msra.mxu0 0.0
        %1375 = vmatprep.subr.mxu0 0.0
        %1376 = vmatpush2.msra.mxu0 0.0
        %1377 = vmatprep.subr.mxu0 0.0
        %1378 = vmatpush2.msra.mxu0 0.0
        %1379 = vmatprep.subr.mxu0 0.0
        %1380 = vmatpush2.msra.mxu0 0.0
        %1381 = vmatprep.subr.mxu0 0.0
        %1382 = vmatpush2.msra.mxu0 0.0
        %1383 = vmatprep.subr.mxu0 0.0
        %1384 = vmatpush2.msra.mxu0 0.0
        %1385 = vmatprep.subr.mxu0 0.0
        %1386 = vmatpush2.msra.mxu0 0.0
        %1387 = vmatprep.subr.mxu0 0.0
        %1388 = vmatpush2.msra.mxu0 0.0
        %1389 = vmatprep.subr.mxu0 0.0
        %1390 = vmatpush2.msra.mxu0 0.0
        %1391 = vmatprep.subr.mxu0 0.0
        %1392 = vmatpush2.msra.mxu0 0.0
        %1393 = vmatprep.subr.mxu0 0.0
        %1394 = vmatpush2.msra.mxu0 0.0
        %1395 = vmatprep.subr.mxu0 0.0
        %1396 = vmatpush2.msra.mxu0 0.0
        %1397 = vmatprep.subr.mxu0 0.0
        %1398 = vmatpush2.msra.mxu0 0.0
        %1399 = vmatprep.subr.mxu0 0.0
        %1400 = vmatpush2.msra.mxu0 0.0
        %1401 = vmatprep.mubr.f32.mxu0 0.0
        %1402 = vmatmul.mubr.f32.gmra.mxu0 %v1335
        %v1403 = vpop.f32.mrf.mxu0
        %v1404 = vadd.f32 0.0, %v1403
        %v1405 = vpop.f32.mrf.mxu0
        %1406 = vdwg.mxu0
        %v1407 = vrcp.pop %v1105
        %v1408 = vrcp.pop %v1108
        %v1409 = vrcp.pop %v1111
        %v1410 = vrcp.pop %v1114
        %v1411 = vmul.f32 %v1185, %v1407
        %v1412 = vmul.f32 %v1258, %v1408
        %v1413 = vmul.f32 %v1331, %v1409
        %v1414 = vmul.f32 %v1404, %v1410
        %v1415 = vcombine.low %v1411, %v1413
        %v1416 = vcombine.high %v1411, %v1413
        %v1418 = vunpack.c.l.s4 1983009808
        %v1419 = vunpack.c.0.s8 %v1418
        %v1420 = vlaneseq
        %v1421 = vshrl.u32 %v1420, 7
        %v1422 = vsub.s32 %v1419, %v1421
        %v1423 = vrot.slane %v1415, %v1422
        %v1425 = vunpack.c.l.s4 1983009808
        %v1426 = vunpack.c.0.s8 %v1425
        %v1427 = vlaneseq
        %v1428 = vshrl.u32 %v1427, 7
        %v1429 = vsub.s32 %v1426, %v1428
        %v1430 = vrot.slane %v1416, %v1429
        %v1431 = vcombine.low %v1412, %v1414
        %v1432 = vcombine.high %v1412, %v1414
        %v1434 = vunpack.c.l.s4 1983009808
        %v1435 = vunpack.c.0.s8 %v1434
        %v1436 = vlaneseq
        %v1437 = vshrl.u32 %v1436, 7
        %v1438 = vsub.s32 %v1435, %v1437
        %v1439 = vrot.slane %v1431, %v1438
        %v1441 = vunpack.c.l.s4 1983009808
        %v1442 = vunpack.c.0.s8 %v1441
        %v1443 = vlaneseq
        %v1444 = vshrl.u32 %v1443, 7
        %v1445 = vsub.s32 %v1442, %v1444
        %v1446 = vrot.slane %v1432, %v1445
        %v1447 = vcombine.low %v1423, %v1439
        %v1448 = vcombine.high %v1423, %v1439
        %v1450 = vunpack.c.l.s4 1934713408
        %v1451 = vunpack.c.0.s8 %v1450
        %v1452 = vlaneseq
        %v1453 = vshrl.u32 %v1452, 7
        %v1454 = vsub.s32 %v1451, %v1453
        %v1455 = vrot.slane %v1447, %v1454
        %v1457 = vunpack.c.l.s4 1934713408
        %v1458 = vunpack.c.0.s8 %v1457
        %v1459 = vlaneseq
        %v1460 = vshrl.u32 %v1459, 7
        %v1461 = vsub.s32 %v1458, %v1460
        %v1462 = vrot.slane %v1448, %v1461
        %v1463 = vcombine.low %v1430, %v1446
        %v1464 = vcombine.high %v1430, %v1446
        %v1466 = vunpack.c.l.s4 1934713408
        %v1467 = vunpack.c.0.s8 %v1466
        %v1468 = vlaneseq
        %v1469 = vshrl.u32 %v1468, 7
        %v1470 = vsub.s32 %v1467, %v1469
        %v1471 = vrot.slane %v1463, %v1470
        %v1473 = vunpack.c.l.s4 1934713408
        %v1474 = vunpack.c.0.s8 %v1473
        %v1475 = vlaneseq
        %v1476 = vshrl.u32 %v1475, 7
        %v1477 = vsub.s32 %v1474, %v1476
        %v1478 = vrot.slane %v1464, %v1477
        %v1479 = vcombine.high %v1455, 0.0
        %v1480 = vcombine.high %v1462, 0.0
        %v1481 = vcombine.high %v1471, 0.0
        %v1482 = vcombine.high %v1478, 0.0
        %v1483 = vcombine.low %v1455, %v1462
        %v1485 = vunpack.c.l.s4 1983009808
        %v1486 = vunpack.c.0.s8 %v1485
        %v1487 = vlaneseq
        %v1488 = vshrl.u32 %v1487, 7
        %v1489 = vsub.s32 %v1486, %v1488
        %v1490 = vrot.slane %v1483, %v1489
        %v1491 = vcombine.low %v1479, %v1480
        %v1493 = vunpack.c.l.s4 1983009808
        %v1494 = vunpack.c.0.s8 %v1493
        %v1495 = vlaneseq
        %v1496 = vshrl.u32 %v1495, 7
        %v1497 = vsub.s32 %v1494, %v1496
        %v1498 = vrot.slane %v1491, %v1497
        %v1499 = vcombine.low %v1471, %v1478
        %v1501 = vunpack.c.l.s4 1983009808
        %v1502 = vunpack.c.0.s8 %v1501
        %v1503 = vlaneseq
        %v1504 = vshrl.u32 %v1503, 7
        %v1505 = vsub.s32 %v1502, %v1504
        %v1506 = vrot.slane %v1499, %v1505
        %v1507 = vcombine.low %v1481, %v1482
        %v1509 = vunpack.c.l.s4 1983009808
        %v1510 = vunpack.c.0.s8 %v1509
        %v1511 = vlaneseq
        %v1512 = vshrl.u32 %v1511, 7
        %v1513 = vsub.s32 %v1510, %v1512
        %v1514 = vrot.slane %v1507, %v1513
        %v1515 = vcombine.low %v1490, %v1498
        %v1516 = vcombine.high %v1490, %v1498
        %v1518 = vunpack.c.l.s4 1934713408
        %v1519 = vunpack.c.0.s8 %v1518
        %v1520 = vlaneseq
        %v1521 = vshrl.u32 %v1520, 7
        %v1522 = vsub.s32 %v1519, %v1521
        %v1523 = vrot.slane %v1515, %v1522
        %v1525 = vunpack.c.l.s4 1934713408
        %v1526 = vunpack.c.0.s8 %v1525
        %v1527 = vlaneseq
        %v1528 = vshrl.u32 %v1527, 7
        %v1529 = vsub.s32 %v1526, %v1528
        %v1530 = vrot.slane %v1516, %v1529
        %v1531 = vcombine.low %v1506, %v1514
        %v1532 = vcombine.high %v1506, %v1514
        %v1534 = vunpack.c.l.s4 1934713408
        %v1535 = vunpack.c.0.s8 %v1534
        %v1536 = vlaneseq
        %v1537 = vshrl.u32 %v1536, 7
        %v1538 = vsub.s32 %v1535, %v1537
        %v1539 = vrot.slane %v1531, %v1538
        %v1541 = vunpack.c.l.s4 1934713408
        %v1542 = vunpack.c.0.s8 %v1541
        %v1543 = vlaneseq
        %v1544 = vshrl.u32 %v1543, 7
        %v1545 = vsub.s32 %v1542, %v1544
        %v1546 = vrot.slane %v1532, %v1545
        %v1547 = vcombine.low %v1523, %v1539
        %v1548 = vcombine.high %v1523, %v1539
        %v1549 = vcombine.low %v1530, %v1546
        %v1550 = vcombine.high %v1530, %v1546
        %1552 = vrot.lane.b32.xlu0 %v1548, 8
        %v1553 = vpop.permute.xlu0 %1552
        %1556 = vrot.lane.b32.xlu0 %v1549, 16
        %v1557 = vpop.permute.xlu0 %1556
        %1560 = vrot.lane.b32.xlu0 %v1550, 24
        %v1561 = vpop.permute.xlu0 %1560
        %v1563 = vsel %vm763, %v1547, %v1553
        %vm1564 = vcmask 130048
        %v1565 = vsel %vm1564, %v1563, %v1557
        %vm1566 = vcmask 195584
        %v1567 = vsel %vm1566, %v1565, %v1561
        %v1568 = vld [vmem:[#allocation7] sm:$0xff]
        %v1569 = vld [vmem:[#allocation7 + $0x8] sm:$0xff]
        %v1570 = vld [vmem:[#allocation7 + $0x10] sm:$0xff]
        %v1571 = vld [vmem:[#allocation7 + $0x18] sm:$0xff]
        %v1572 = vld [vmem:[%s3] sm:$0x1]
        %v1574 = vlaneseq
        %v1575 = vshrl.u32 %v1574, 7
        %v1576 = vsub.s32 0, %v1575
        %v1577 = vrot.slane %v1572, %v1576
        %v1580 = vsel %vm247, %v1567, 0
        %1582 = vmatprep.subr.mxu0 0.0
        %1583 = vmatpush1.msra.mxu0 0.0
        %1584 = vmatprep.subr.mxu0 0.0
        %1585 = vmatpush1.msra.mxu0 0.0
        %1586 = vmatprep.subr.mxu0 0.0
        %1587 = vmatpush1.msra.mxu0 0.0
        %1588 = vmatprep.subr.mxu0 0.0
        %1589 = vmatpush1.msra.mxu0 0.0
        %1590 = vmatprep.subr.mxu0 0.0
        %1591 = vmatpush1.msra.mxu0 0.0
        %1592 = vmatprep.subr.mxu0 0.0
        %1593 = vmatpush1.msra.mxu0 0.0
        %1594 = vmatprep.subr.mxu0 0.0
        %1595 = vmatpush1.msra.mxu0 0.0
        %1596 = vmatprep.subr.mxu0 0.0
        %1597 = vmatpush1.msra.mxu0 0.0
        %1598 = vmatprep.subr.mxu0 0.0
        %1599 = vmatpush1.msra.mxu0 0.0
        %1600 = vmatprep.subr.mxu0 0.0
        %1601 = vmatpush1.msra.mxu0 0.0
        %1602 = vmatprep.subr.mxu0 0.0
        %1603 = vmatpush1.msra.mxu0 0.0
        %1604 = vmatprep.subr.mxu0 0.0
        %1605 = vmatpush1.msra.mxu0 0.0
        %1606 = vmatprep.subr.mxu0 0.0
        %1607 = vmatpush1.msra.mxu0 %v1571
        %1608 = vmatprep.subr.mxu0 0.0
        %1609 = vmatpush1.msra.mxu0 %v1570
        %1610 = vmatprep.subr.mxu0 0.0
        %1611 = vmatpush1.msra.mxu0 %v1569
        %1612 = vmatprep.subr.mxu0 0.0
        %1613 = vmatpush1.msra.mxu0 %v1568
        %1614 = vmatprep.subr.mxu0 0.0
        %1615 = vmatpush2.msra.mxu0 0.0
        %1616 = vmatprep.subr.mxu0 0.0
        %1617 = vmatpush2.msra.mxu0 0.0
        %1618 = vmatprep.subr.mxu0 0.0
        %1619 = vmatpush2.msra.mxu0 0.0
        %1620 = vmatprep.subr.mxu0 0.0
        %1621 = vmatpush2.msra.mxu0 0.0
        %1622 = vmatprep.subr.mxu0 0.0
        %1623 = vmatpush2.msra.mxu0 0.0
        %1624 = vmatprep.subr.mxu0 0.0
        %1625 = vmatpush2.msra.mxu0 0.0
        %1626 = vmatprep.subr.mxu0 0.0
        %1627 = vmatpush2.msra.mxu0 0.0
        %1628 = vmatprep.subr.mxu0 0.0
        %1629 = vmatpush2.msra.mxu0 0.0
        %1630 = vmatprep.subr.mxu0 0.0
        %1631 = vmatpush2.msra.mxu0 0.0
        %1632 = vmatprep.subr.mxu0 0.0
        %1633 = vmatpush2.msra.mxu0 0.0
        %1634 = vmatprep.subr.mxu0 0.0
        %1635 = vmatpush2.msra.mxu0 0.0
        %1636 = vmatprep.subr.mxu0 0.0
        %1637 = vmatpush2.msra.mxu0 0.0
        %1638 = vmatprep.subr.mxu0 0.0
        %1639 = vmatpush2.msra.mxu0 0.0
        %1640 = vmatprep.subr.mxu0 0.0
        %1641 = vmatpush2.msra.mxu0 0.0
        %1642 = vmatprep.subr.mxu0 0.0
        %1643 = vmatpush2.msra.mxu0 0.0
        %1644 = vmatprep.subr.mxu0 0.0
        %1645 = vmatpush2.msra.mxu0 0.0
        %1646 = vmatprep.mubr.f32.mxu0 0.0
        %1647 = vmatmul.mubr.f32.gmra.mxu0 %v1580
        %v1648 = vpop.f32.mrf.mxu0
        %v1649 = vadd.f32 %v1577, %v1648
        %v1650 = vpop.f32.mrf.mxu0
        %1651 = vdwg.mxu0
        %1652 = vst.msk [vmem:[%s241] sm:$0xff] %vm247, %v1649
        %s1653 = sand.u32 %s119, 1
        %s1654 = scalar_lea.sflag [#allocation4], %s1653
        %s1655 = sand.u32 %s119, 1
        %s1656 = smul.addr %s1655, 8
        %s1657 = scalar_lea.vmem [#allocation8], %s1656
        // Predicated region
        $region49: #{tpu_custom_call.1} parent=35 // pred_check
          %p1658 = pneg %p129
        $region50: #{tpu_custom_call.1} parent=35 // pred_check_branch
          %1660 = sbr.rel (%p1658) target = $region52
        $region51: #{tpu_custom_call.1} parent=35 // pred_region
          %s1662 = ssub.s32 128, 128
          %1663 = vsyncadd %s1654, %s1662
          %s1664 = smul.addr %s22, 128
          %s1665 = scalar_lea.hbm %s4, %s1664
          %s1667 = sshll.u32 %s1657, 4
          %s1668 = int_to_ptr.vmem [resolvable:$true] %s1667
          %1670 = dma.vmem_to_hbm [thread:$0]  %s1668, 128, %s1665, %s1654
        $region52: #{tpu_custom_call.1} parent=35 // pred_fallthru
          _
      $region36: #{tpu_custom_call.1} parent=5 // pred_fallthru
        _
      %p1671 = scmp.le.s32.totalorder 2, %s17
      // Predicated region
      $region53: #{tpu_custom_call.1} parent=5 // pred_check
        %p1672 = pneg %p1671
      $region54: #{tpu_custom_call.1} parent=5 // pred_check_branch
        %1674 = sbr.rel (%p1672) target = $region56
      $region55: #{tpu_custom_call.1} parent=5 // pred_region
        %s1675 = ssub.s32 %s17, 2
        // Predicated region
        $region57: #{tpu_custom_call.1} parent=55 // pred_check
          %p1676 = pneg %p135
        $region58: #{tpu_custom_call.1} parent=55 // pred_check_branch
          %1678 = sbr.rel (%p1676) target = $region60
        $region59: #{tpu_custom_call.1} parent=55 // pred_region
          %s1679 = sand.u32 %s120, 1
          %s1680 = scalar_lea.sflag [#allocation4], %s1679
          %s1681 = sand.u32 %s120, 1
          %s1682 = smul.addr %s1681, 8
          %s1683 = scalar_lea.vmem [#allocation8], %s1682
          %1684 = dma.done %s1680, 128
        $region60: #{tpu_custom_call.1} parent=55 // pred_fallthru
          _
      $region56: #{tpu_custom_call.1} parent=5 // pred_fallthru
        _
    $region6: #{tpu_custom_call.1} parent=1 // loop_footer
      %s21 = sadd.s32 1, %s17
    $region7: #{tpu_custom_call.1} parent=1 // loop_footer_branch
      %16 = sbr.rel target = $region3
    $region8: #{tpu_custom_call.1} parent=1 // loop_exit
      _
    %1685 = vsyncpa [#allocation3], 1
    %s1686 = scalar_lea.sflag [#allocation3], 1
    %1687 = vsyncpa %s1686, 1
    %1688 = vsyncpa [#allocation6], 1
    %1689 = vsyncpa [#allocation4], 1
    %s1690 = scalar_lea.sflag [#allocation4], 1
    %1691 = vsyncpa %s1690, 1

</llo_original>
